<compile_context>
chip_gen: v5e
topology: v5e:2x2
jax: 0.10.0
libtpu: 0.0.40
codegen_flags: <defaults>
</compile_context>

<pallas_src>
import functools

import jax
import jax.numpy as jnp
from jax.experimental import pallas as pl
from jax.experimental.pallas import tpu as pltpu


# ----------------------------------------------------------------------------
# Grid extension (matches B_batch's extend_grid)
# ----------------------------------------------------------------------------
def extend_grid(grid, k):
    """grid: (D, size, num+1) -> (D, size, num+1 + 2k)."""
    h = (grid[:, :, -1:] - grid[:, :, :1]) / (grid.shape[2] - 1)
    for _ in range(k):
        grid = jnp.concatenate([grid[:, :, :1] - h, grid], axis=2)
        grid = jnp.concatenate([grid, grid[:, :, -1:] + h], axis=2)
    return grid


# ----------------------------------------------------------------------------
# Hardware query (robust fallbacks) + tile selection
# ----------------------------------------------------------------------------
def _tpu_hw_info():
    vmem_cap = 64 << 20          # conservative default (v7x physical VMEM / TC)
    num_tc = 1
    try:
        info = pltpu.get_tpu_info()
        vmem_cap = int(getattr(info, "vmem_capacity_bytes", vmem_cap))
    except Exception:
        pass
    try:
        kind = jax.devices()[0].device_kind.lower()
        if "v7" in kind or "7x" in kind:
            num_tc = 2           # dual TensorCore: keep step count a multiple of 2
    except Exception:
        pass
    return vmem_cap, num_tc


def _pick_tile_d(D, S, R, *, vmem_cap, num_tc, lane_window=128, max_tile=512):
    """Largest DMA tile (multiple of 128) that fits a padded-VMEM budget; on
    dual-TC parts prefer a step count that's a multiple of num_tc."""
    if D % lane_window != 0:
        return D                                   # single full-extent block
    s_pad = ((S + 7) // 8) * 8                     # sublane padding is real VMEM
    per_lane = 2 * 4 * s_pad * (R + 1) + 2 * 4 * 8  # dbl-buffered params+x, out
    cap_by_vmem = int((0.4 * vmem_cap) // per_lane)
    cap_by_vmem = max(lane_window, (cap_by_vmem // lane_window) * lane_window)
    cap = min(max_tile, cap_by_vmem, D)
    cands = [t for t in range(cap, lane_window - 1, -lane_window) if D % t == 0]
    if not cands:
        return D
    for t in cands:
        if (D // t) % num_tc == 0:
            return t
    return cands[0]


# ----------------------------------------------------------------------------
# One-time (init-time) parameter re-layout:
#   grid_ext (D, size, G_ext)  \
#   coef     (D, size, num+k)   } -> single packed tensor (n_steps, R, S, tile_d)
#   sb/sp/mk (D, size)         /    R = G_ext + n_bases + 3,  S-row = i*out_dim + o
# Each grid step's parameter DMA is one contiguous slab.
# ----------------------------------------------------------------------------
def prepare_kan_params(grid, coef, scale_base, scale_sp, mask, *, in_dim, out_dim, k):
    D = grid.shape[0]
    S = in_dim * out_dim

    g_ext = extend_grid(grid, k)                   # (D, size, G_ext)
    G_ext = g_ext.shape[2]
    n_bases = coef.shape[2]                        # num + k
    R = G_ext + n_bases + 3

    def pack3(a):   # (D, size, L) -> (L, S, D), torch size index s = o*in_dim + i
        L = a.shape[2]
        return a.reshape(D, out_dim, in_dim, L).transpose(3, 2, 1, 0).reshape(L, S, D)

    def pack2(a):   # (D, size) -> (1, S, D)
        return a.reshape(D, out_dim, in_dim).transpose(2, 1, 0).reshape(1, S, D)

    P = jnp.concatenate(
        [pack3(g_ext), pack3(coef), pack2(scale_base), pack2(scale_sp), pack2(mask)],
        axis=0)                                    # (R, S, D), f32

    vmem_cap, num_tc = _tpu_hw_info()
    tile_d = _pick_tile_d(D, S, R, vmem_cap=vmem_cap, num_tc=num_tc)
    n_steps = D // tile_d

    # Pre-tile along D so each step reads one contiguous slab.
    P_t = P.reshape(R, S, n_steps, tile_d).transpose(2, 0, 1, 3)  # (n_steps,R,S,tile_d)

    s_pad = ((S + 7) // 8) * 8
    needed = 2 * 4 * s_pad * tile_d * (R + 1) + 2 * 4 * 8 * tile_d
    vmem_limit = int(min(0.5 * vmem_cap, max(32 << 20, 3 * needed)))
    vmem_limit = max(vmem_limit, 2 * needed)

    cfg = dict(tile_d=tile_d, vmem_limit_bytes=vmem_limit)
    return P_t, cfg


# ----------------------------------------------------------------------------
# Pallas kernel: packed B-spline (Cox-de Boor) + SiLU residual + combine +
# in_dim reduction.  Loops static & unrolled; 128-lane compute windows inside
# the DMA tile keep the live basis/knot set well inside the 64-vreg file.
# ----------------------------------------------------------------------------
def make_kan_kernel(*, in_dim, out_dim, k, g_ext_len, n_bases, tile_d, lane_window=128):
    S = in_dim * out_dim
    G = g_ext_len
    C0 = G                    # coef rows start
    SB = G + n_bases          # scale_base row
    SP = SB + 1               # scale_sp row
    MK = SP + 1               # mask row
    offs = list(range(0, tile_d, lane_window))

    def kernel(x_ref, p_ref, y_ref):
        for off in offs:
            w = min(lane_window, tile_d - off)
            sl = slice(off, off + w)

            xf = x_ref[0, :, sl]                              # (S, w) fanned x
            # Hoist knot slabs once per window (~G vregs live).
            g = [p_ref[0, m, :, sl] for m in range(G)]

            # order-0 bases: B0[m] = 1[ g[m] <= x < g[m+1] ]
            b = [((xf >= g[m]) & (xf < g[m + 1])).astype(jnp.float32)
                 for m in range(G - 1)]

            # Cox-de Boor with right = 1 - left identity; knot-difference
            # reciprocals computed on the EUP (no precomputed r tensor, no
            # degenerate-knot guard -> matches reference semantics).
            for p in range(1, k + 1):
                nb = G - p - 1
                a_cur = (xf - g[0]) * pl.reciprocal(g[p] - g[0])
                for m in range(nb):
                    a_nxt = (xf - g[m + 1]) * pl.reciprocal(g[m + 1 + p] - g[m + 1])
                    b[m] = a_cur * b[m] + (1.0 - a_nxt) * b[m + 1]
                    a_cur = a_nxt
                b = b[:nb]

            # spline(x) = sum_m coef[m] * B_k[m]
            spline = p_ref[0, C0, :, sl] * b[0]
            for m in range(1, n_bases):
                spline = spline + p_ref[0, C0 + m, :, sl] * b[m]

            # residual b(x) = SiLU(x) (sigmoid on the EUP), combine + mask
            base = xf * jax.nn.sigmoid(xf)
            contrib = p_ref[0, MK, :, sl] * (p_ref[0, SB, :, sl] * base
                                             + p_ref[0, SP, :, sl] * spline)

            # reduce over in_dim: rows are i-major / o-minor, so the partial
            # sums are contiguous (out_dim, w) sublane slices.
            acc = contrib[0:out_dim]
            for i in range(1, in_dim):
                acc = acc + contrib[i * out_dim:(i + 1) * out_dim]
            y_ref[:, sl] = acc.astype(y_ref.dtype)

    return kernel


# ----------------------------------------------------------------------------
# Forward wrapper
# ----------------------------------------------------------------------------
def kan_layer_forward(x, params_tiled, *, in_dim, out_dim, k, num,
                      tile_d, vmem_limit_bytes):
    D = x.shape[0]
    S = in_dim * out_dim
    G_ext = num + 1 + 2 * k
    n_bases = num + k
    R = G_ext + n_bases + 3
    assert D % tile_d == 0 and x.shape == (D, in_dim)
    n_steps = D // tile_d
    assert params_tiled.shape == (n_steps, R, S, tile_d)

    # Fan x over out_dim (row s = i*out_dim + o) and pre-tile along D.
    x_f = jnp.repeat(x.T, out_dim, axis=0)                       # (S, D)
    x_t = x_f.reshape(S, n_steps, tile_d).transpose(1, 0, 2)     # (n_steps, S, tile_d)

    kernel = make_kan_kernel(in_dim=in_dim, out_dim=out_dim, k=k,
                             g_ext_len=G_ext, n_bases=n_bases, tile_d=tile_d)

    y_t = pl.pallas_call(
        kernel,
        out_shape=jax.ShapeDtypeStruct((out_dim, D), x.dtype),
        grid_spec=pltpu.PrefetchScalarGridSpec(
            num_scalar_prefetch=0,
            grid=(n_steps,),
            in_specs=[
                pl.BlockSpec((1, S, tile_d), lambda i: (i, 0, 0)),
                pl.BlockSpec((1, R, S, tile_d), lambda i: (i, 0, 0, 0)),
            ],
            out_specs=pl.BlockSpec((out_dim, tile_d), lambda i: (0, i)),
        ),
        compiler_params=pltpu.CompilerParams(
            dimension_semantics=("parallel",),
            vmem_limit_bytes=int(vmem_limit_bytes),
        ),
    )(x_t, params_tiled)

    return y_t.T                                                 # (D, out_dim)


# ----------------------------------------------------------------------------
# Pure-JAX reference (mirrors the PyTorch forward exactly) for verification
# ----------------------------------------------------------------------------
def kan_forward_ref(x, grid, coef, scale_base, scale_sp, mask, *, in_dim, out_dim, k):
    D = x.shape[0]
    size = in_dim * out_dim
    xf = jnp.broadcast_to(x[:, None, :], (D, out_dim, in_dim)).reshape(D, size)
    g = extend_grid(grid, k)                                     # (D, size, G_ext)
    xs = xf[:, :, None]
    B = ((xs >= g[:, :, :-1]) & (xs < g[:, :, 1:])).astype(x.dtype)
    for p in range(1, k + 1):
        nb = g.shape[2] - p - 1
        B = ((xs - g[:, :, :nb]) / (g[:, :, p:p + nb] - g[:, :, :nb]) * B[:, :, :nb]
             + (g[:, :, p + 1:p + 1 + nb] - xs)
             / (g[:, :, p + 1:p + 1 + nb] - g[:, :, 1:1 + nb]) * B[:, :, 1:1 + nb])
    spline = jnp.sum(coef * B, axis=2)
    base = xf * jax.nn.sigmoid(xf)
    y = mask * (scale_base * base + scale_sp * spline)
    return jnp.sum(y.reshape(D, out_dim, in_dim), axis=2)


# ----------------------------------------------------------------------------
# Main
# ----------------------------------------------------------------------------
if __name__ == "__main__":
    in_dim, out_dim, d_model, num, k = 3, 2, 256, 5, 3
    size = in_dim * out_dim

    key = jax.random.PRNGKey(0)
    k_coef, k_x, k_g2, k_c2, k_x2, k_s2 = jax.random.split(key, 6)

    # ---- Test 1: uniform grid (matches KANLayer.__init__) ----
    grid = jnp.broadcast_to(
        jnp.linspace(-1.0, 1.0, num + 1, dtype=jnp.float32),
        (d_model, size, num + 1)).astype(jnp.float32)
    # TODO(synk): original init fits coef via curve2coef (torch lstsq against random
    # noise); here coef is a deterministic random tensor of the same shape.
    coef = 0.1 * jax.random.normal(k_coef, (d_model, size, num + k), dtype=jnp.float32)
    scale_base = jnp.ones((d_model, size), jnp.float32)
    scale_sp = jnp.ones((d_model, size), jnp.float32)
    mask = jnp.ones((d_model, size), jnp.float32)
    x = jax.random.uniform(k_x, (d_model, in_dim), jnp.float32, minval=-0.95, maxval=0.95)

    params, cfg = prepare_kan_params(grid, coef, scale_base, scale_sp, mask,
                                     in_dim=in_dim, out_dim=out_dim, k=k)
    fwd = jax.jit(functools.partial(kan_layer_forward, in_dim=in_dim, out_dim=out_dim,
                                    k=k, num=num, **cfg))
    y = jax.block_until_ready(fwd(x, params))
    y_ref = kan_forward_ref(x, grid, coef, scale_base, scale_sp, mask,
                            in_dim=in_dim, out_dim=out_dim, k=k)
    assert y.shape == (d_model, out_dim), y.shape
    assert jnp.allclose(y, y_ref, atol=1e-5, rtol=1e-5), \
        float(jnp.max(jnp.abs(y - y_ref)))

    # ---- Test 2: random strictly-monotone per-(d,i,o) grids + random scales ----
    # (stresses the packed sublane layout, the i-major/o-minor ordering and the
    #  in-kernel knot reciprocals)
    inc = jax.random.uniform(k_g2, (d_model, size, num), jnp.float32,
                             minval=0.1, maxval=0.5)
    grid2 = jnp.concatenate([jnp.full((d_model, size, 1), -1.0, jnp.float32),
                             -1.0 + jnp.cumsum(inc, axis=2)], axis=2)
    coef2 = jax.random.normal(k_c2, (d_model, size, num + k), jnp.float32)
    sb2 = jax.random.normal(k_s2, (d_model, size), jnp.float32)
    sp2 = 1.0 + 0.1 * jax.random.normal(jax.random.fold_in(k_s2, 1),
                                        (d_model, size), jnp.float32)
    mk2 = (jax.random.uniform(jax.random.fold_in(k_s2, 2),
                              (d_model, size)) > 0.2).astype(jnp.float32)
    x2 = jax.random.uniform(k_x2, (d_model, in_dim), jnp.float32,
                            minval=-0.9, maxval=0.4)

    params2, cfg2 = prepare_kan_params(grid2, coef2, sb2, sp2, mk2,
                                       in_dim=in_dim, out_dim=out_dim, k=k)
    fwd2 = jax.jit(functools.partial(kan_layer_forward, in_dim=in_dim, out_dim=out_dim,
                                     k=k, num=num, **cfg2))
    y2 = jax.block_until_ready(fwd2(x2, params2))
    y2_ref = kan_forward_ref(x2, grid2, coef2, sb2, sp2, mk2,
                             in_dim=in_dim, out_dim=out_dim, k=k)
    assert jnp.allclose(y2, y2_ref, atol=1e-4, rtol=1e-4), \
        float(jnp.max(jnp.abs(y2 - y2_ref)))

    print("KERNEL_OK")
</pallas_src>

<mosaic_0001>
module attributes {stable_mosaic.version = 11 : i64} {
  func.func @kernel(%arg0: i32, %arg1: memref<1x6x256xf32, #tpu.memory_space<vmem>>, %arg2: memref<1x23x6x256xf32, #tpu.memory_space<vmem>>, %arg3: memref<2x256xf32, #tpu.memory_space<vmem>>) attributes {dimension_semantics = [#tpu.dimension_semantics<parallel>], iteration_bounds = array<i64: 1>, scalar_prefetch = 0 : i64, scratch_operands = 0 : i64, tpu.core_type = #tpu.core_type<tc>, window_params = [{transform_indices = @transform_0, window_bounds = array<i64: 1, 6, 256>}, {transform_indices = @transform_1, window_bounds = array<i64: 1, 23, 6, 256>}, {transform_indices = @transform_2, window_bounds = array<i64: 2, 256>}]} {
    %c0 = arith.constant 0 : index
    %c0_0 = arith.constant 0 : index
    %c0_1 = arith.constant 0 : index
    %0 = vector.load %arg1[%c0, %c0_0, %c0_1] : memref<1x6x256xf32, #tpu.memory_space<vmem>>, vector<1x6x128xf32>
    %1 = vector.shape_cast %0 : vector<1x6x128xf32> to vector<6x128xf32>
    %c0_2 = arith.constant 0 : index
    %c0_3 = arith.constant 0 : index
    %c0_4 = arith.constant 0 : index
    %c0_5 = arith.constant 0 : index
    %2 = vector.load %arg2[%c0_2, %c0_3, %c0_4, %c0_5] : memref<1x23x6x256xf32, #tpu.memory_space<vmem>>, vector<1x1x6x128xf32>
    %3 = vector.shape_cast %2 : vector<1x1x6x128xf32> to vector<6x128xf32>
    %c0_6 = arith.constant 0 : index
    %c1 = arith.constant 1 : index
    %c0_7 = arith.constant 0 : index
    %c0_8 = arith.constant 0 : index
    %4 = vector.load %arg2[%c0_6, %c1, %c0_7, %c0_8] : memref<1x23x6x256xf32, #tpu.memory_space<vmem>>, vector<1x1x6x128xf32>
    %5 = vector.shape_cast %4 : vector<1x1x6x128xf32> to vector<6x128xf32>
    %c0_9 = arith.constant 0 : index
    %c2 = arith.constant 2 : index
    %c0_10 = arith.constant 0 : index
    %c0_11 = arith.constant 0 : index
    %6 = vector.load %arg2[%c0_9, %c2, %c0_10, %c0_11] : memref<1x23x6x256xf32, #tpu.memory_space<vmem>>, vector<1x1x6x128xf32>
    %7 = vector.shape_cast %6 : vector<1x1x6x128xf32> to vector<6x128xf32>
    %c0_12 = arith.constant 0 : index
    %c3 = arith.constant 3 : index
    %c0_13 = arith.constant 0 : index
    %c0_14 = arith.constant 0 : index
    %8 = vector.load %arg2[%c0_12, %c3, %c0_13, %c0_14] : memref<1x23x6x256xf32, #tpu.memory_space<vmem>>, vector<1x1x6x128xf32>
    %9 = vector.shape_cast %8 : vector<1x1x6x128xf32> to vector<6x128xf32>
    %c0_15 = arith.constant 0 : index
    %c4 = arith.constant 4 : index
    %c0_16 = arith.constant 0 : index
    %c0_17 = arith.constant 0 : index
    %10 = vector.load %arg2[%c0_15, %c4, %c0_16, %c0_17] : memref<1x23x6x256xf32, #tpu.memory_space<vmem>>, vector<1x1x6x128xf32>
    %11 = vector.shape_cast %10 : vector<1x1x6x128xf32> to vector<6x128xf32>
    %c0_18 = arith.constant 0 : index
    %c5 = arith.constant 5 : index
    %c0_19 = arith.constant 0 : index
    %c0_20 = arith.constant 0 : index
    %12 = vector.load %arg2[%c0_18, %c5, %c0_19, %c0_20] : memref<1x23x6x256xf32, #tpu.memory_space<vmem>>, vector<1x1x6x128xf32>
    %13 = vector.shape_cast %12 : vector<1x1x6x128xf32> to vector<6x128xf32>
    %c0_21 = arith.constant 0 : index
    %c6 = arith.constant 6 : index
    %c0_22 = arith.constant 0 : index
    %c0_23 = arith.constant 0 : index
    %14 = vector.load %arg2[%c0_21, %c6, %c0_22, %c0_23] : memref<1x23x6x256xf32, #tpu.memory_space<vmem>>, vector<1x1x6x128xf32>
    %15 = vector.shape_cast %14 : vector<1x1x6x128xf32> to vector<6x128xf32>
    %c0_24 = arith.constant 0 : index
    %c7 = arith.constant 7 : index
    %c0_25 = arith.constant 0 : index
    %c0_26 = arith.constant 0 : index
    %16 = vector.load %arg2[%c0_24, %c7, %c0_25, %c0_26] : memref<1x23x6x256xf32, #tpu.memory_space<vmem>>, vector<1x1x6x128xf32>
    %17 = vector.shape_cast %16 : vector<1x1x6x128xf32> to vector<6x128xf32>
    %c0_27 = arith.constant 0 : index
    %c8 = arith.constant 8 : index
    %c0_28 = arith.constant 0 : index
    %c0_29 = arith.constant 0 : index
    %18 = vector.load %arg2[%c0_27, %c8, %c0_28, %c0_29] : memref<1x23x6x256xf32, #tpu.memory_space<vmem>>, vector<1x1x6x128xf32>
    %19 = vector.shape_cast %18 : vector<1x1x6x128xf32> to vector<6x128xf32>
    %c0_30 = arith.constant 0 : index
    %c9 = arith.constant 9 : index
    %c0_31 = arith.constant 0 : index
    %c0_32 = arith.constant 0 : index
    %20 = vector.load %arg2[%c0_30, %c9, %c0_31, %c0_32] : memref<1x23x6x256xf32, #tpu.memory_space<vmem>>, vector<1x1x6x128xf32>
    %21 = vector.shape_cast %20 : vector<1x1x6x128xf32> to vector<6x128xf32>
    %c0_33 = arith.constant 0 : index
    %c10 = arith.constant 10 : index
    %c0_34 = arith.constant 0 : index
    %c0_35 = arith.constant 0 : index
    %22 = vector.load %arg2[%c0_33, %c10, %c0_34, %c0_35] : memref<1x23x6x256xf32, #tpu.memory_space<vmem>>, vector<1x1x6x128xf32>
    %23 = vector.shape_cast %22 : vector<1x1x6x128xf32> to vector<6x128xf32>
    %c0_36 = arith.constant 0 : index
    %c11 = arith.constant 11 : index
    %c0_37 = arith.constant 0 : index
    %c0_38 = arith.constant 0 : index
    %24 = vector.load %arg2[%c0_36, %c11, %c0_37, %c0_38] : memref<1x23x6x256xf32, #tpu.memory_space<vmem>>, vector<1x1x6x128xf32>
    %25 = vector.shape_cast %24 : vector<1x1x6x128xf32> to vector<6x128xf32>
    %26 = arith.cmpf oge, %1, %3 : vector<6x128xf32>
    %27 = arith.cmpf olt, %1, %5 : vector<6x128xf32>
    %28 = arith.andi %26, %27 : vector<6x128xi1>
    %29 = arith.extui %28 : vector<6x128xi1> to vector<6x128xi32>
    %30 = arith.sitofp %29 : vector<6x128xi32> to vector<6x128xf32>
    %31 = arith.cmpf oge, %1, %5 : vector<6x128xf32>
    %32 = arith.cmpf olt, %1, %7 : vector<6x128xf32>
    %33 = arith.andi %31, %32 : vector<6x128xi1>
    %34 = arith.extui %33 : vector<6x128xi1> to vector<6x128xi32>
    %35 = arith.sitofp %34 : vector<6x128xi32> to vector<6x128xf32>
    %36 = arith.cmpf oge, %1, %7 : vector<6x128xf32>
    %37 = arith.cmpf olt, %1, %9 : vector<6x128xf32>
    %38 = arith.andi %36, %37 : vector<6x128xi1>
    %39 = arith.extui %38 : vector<6x128xi1> to vector<6x128xi32>
    %40 = arith.sitofp %39 : vector<6x128xi32> to vector<6x128xf32>
    %41 = arith.cmpf oge, %1, %9 : vector<6x128xf32>
    %42 = arith.cmpf olt, %1, %11 : vector<6x128xf32>
    %43 = arith.andi %41, %42 : vector<6x128xi1>
    %44 = arith.extui %43 : vector<6x128xi1> to vector<6x128xi32>
    %45 = arith.sitofp %44 : vector<6x128xi32> to vector<6x128xf32>
    %46 = arith.cmpf oge, %1, %11 : vector<6x128xf32>
    %47 = arith.cmpf olt, %1, %13 : vector<6x128xf32>
    %48 = arith.andi %46, %47 : vector<6x128xi1>
    %49 = arith.extui %48 : vector<6x128xi1> to vector<6x128xi32>
    %50 = arith.sitofp %49 : vector<6x128xi32> to vector<6x128xf32>
    %51 = arith.cmpf oge, %1, %13 : vector<6x128xf32>
    %52 = arith.cmpf olt, %1, %15 : vector<6x128xf32>
    %53 = arith.andi %51, %52 : vector<6x128xi1>
    %54 = arith.extui %53 : vector<6x128xi1> to vector<6x128xi32>
    %55 = arith.sitofp %54 : vector<6x128xi32> to vector<6x128xf32>
    %56 = arith.cmpf oge, %1, %15 : vector<6x128xf32>
    %57 = arith.cmpf olt, %1, %17 : vector<6x128xf32>
    %58 = arith.andi %56, %57 : vector<6x128xi1>
    %59 = arith.extui %58 : vector<6x128xi1> to vector<6x128xi32>
    %60 = arith.sitofp %59 : vector<6x128xi32> to vector<6x128xf32>
    %61 = arith.cmpf oge, %1, %17 : vector<6x128xf32>
    %62 = arith.cmpf olt, %1, %19 : vector<6x128xf32>
    %63 = arith.andi %61, %62 : vector<6x128xi1>
    %64 = arith.extui %63 : vector<6x128xi1> to vector<6x128xi32>
    %65 = arith.sitofp %64 : vector<6x128xi32> to vector<6x128xf32>
    %66 = arith.cmpf oge, %1, %19 : vector<6x128xf32>
    %67 = arith.cmpf olt, %1, %21 : vector<6x128xf32>
    %68 = arith.andi %66, %67 : vector<6x128xi1>
    %69 = arith.extui %68 : vector<6x128xi1> to vector<6x128xi32>
    %70 = arith.sitofp %69 : vector<6x128xi32> to vector<6x128xf32>
    %71 = arith.cmpf oge, %1, %21 : vector<6x128xf32>
    %72 = arith.cmpf olt, %1, %23 : vector<6x128xf32>
    %73 = arith.andi %71, %72 : vector<6x128xi1>
    %74 = arith.extui %73 : vector<6x128xi1> to vector<6x128xi32>
    %75 = arith.sitofp %74 : vector<6x128xi32> to vector<6x128xf32>
    %76 = arith.cmpf oge, %1, %23 : vector<6x128xf32>
    %77 = arith.cmpf olt, %1, %25 : vector<6x128xf32>
    %78 = arith.andi %76, %77 : vector<6x128xi1>
    %79 = arith.extui %78 : vector<6x128xi1> to vector<6x128xi32>
    %80 = arith.sitofp %79 : vector<6x128xi32> to vector<6x128xf32>
    %81 = arith.subf %1, %3 : vector<6x128xf32>
    %82 = arith.subf %5, %3 : vector<6x128xf32>
    %83 = tpu.reciprocal %82 : vector<6x128xf32> -> vector<6x128xf32>
    %84 = arith.mulf %81, %83 : vector<6x128xf32>
    %85 = arith.subf %1, %5 : vector<6x128xf32>
    %86 = arith.subf %7, %5 : vector<6x128xf32>
    %87 = tpu.reciprocal %86 : vector<6x128xf32> -> vector<6x128xf32>
    %88 = arith.mulf %85, %87 : vector<6x128xf32>
    %89 = arith.mulf %84, %30 : vector<6x128xf32>
    %cst = arith.constant 1.000000e+00 : f32
    %90 = vector.broadcast %cst : f32 to vector<6x128xf32>
    %91 = arith.subf %90, %88 : vector<6x128xf32>
    %92 = arith.mulf %91, %35 : vector<6x128xf32>
    %93 = arith.addf %89, %92 : vector<6x128xf32>
    %94 = arith.subf %1, %7 : vector<6x128xf32>
    %95 = arith.subf %9, %7 : vector<6x128xf32>
    %96 = tpu.reciprocal %95 : vector<6x128xf32> -> vector<6x128xf32>
    %97 = arith.mulf %94, %96 : vector<6x128xf32>
    %98 = arith.mulf %88, %35 : vector<6x128xf32>
    %cst_39 = arith.constant 1.000000e+00 : f32
    %99 = vector.broadcast %cst_39 : f32 to vector<6x128xf32>
    %100 = arith.subf %99, %97 : vector<6x128xf32>
    %101 = arith.mulf %100, %40 : vector<6x128xf32>
    %102 = arith.addf %98, %101 : vector<6x128xf32>
    %103 = arith.subf %1, %9 : vector<6x128xf32>
    %104 = arith.subf %11, %9 : vector<6x128xf32>
    %105 = tpu.reciprocal %104 : vector<6x128xf32> -> vector<6x128xf32>
    %106 = arith.mulf %103, %105 : vector<6x128xf32>
    %107 = arith.mulf %97, %40 : vector<6x128xf32>
    %cst_40 = arith.constant 1.000000e+00 : f32
    %108 = vector.broadcast %cst_40 : f32 to vector<6x128xf32>
    %109 = arith.subf %108, %106 : vector<6x128xf32>
    %110 = arith.mulf %109, %45 : vector<6x128xf32>
    %111 = arith.addf %107, %110 : vector<6x128xf32>
    %112 = arith.subf %1, %11 : vector<6x128xf32>
    %113 = arith.subf %13, %11 : vector<6x128xf32>
    %114 = tpu.reciprocal %113 : vector<6x128xf32> -> vector<6x128xf32>
    %115 = arith.mulf %112, %114 : vector<6x128xf32>
    %116 = arith.mulf %106, %45 : vector<6x128xf32>
    %cst_41 = arith.constant 1.000000e+00 : f32
    %117 = vector.broadcast %cst_41 : f32 to vector<6x128xf32>
    %118 = arith.subf %117, %115 : vector<6x128xf32>
    %119 = arith.mulf %118, %50 : vector<6x128xf32>
    %120 = arith.addf %116, %119 : vector<6x128xf32>
    %121 = arith.subf %1, %13 : vector<6x128xf32>
    %122 = arith.subf %15, %13 : vector<6x128xf32>
    %123 = tpu.reciprocal %122 : vector<6x128xf32> -> vector<6x128xf32>
    %124 = arith.mulf %121, %123 : vector<6x128xf32>
    %125 = arith.mulf %115, %50 : vector<6x128xf32>
    %cst_42 = arith.constant 1.000000e+00 : f32
    %126 = vector.broadcast %cst_42 : f32 to vector<6x128xf32>
    %127 = arith.subf %126, %124 : vector<6x128xf32>
    %128 = arith.mulf %127, %55 : vector<6x128xf32>
    %129 = arith.addf %125, %128 : vector<6x128xf32>
    %130 = arith.subf %1, %15 : vector<6x128xf32>
    %131 = arith.subf %17, %15 : vector<6x128xf32>
    %132 = tpu.reciprocal %131 : vector<6x128xf32> -> vector<6x128xf32>
    %133 = arith.mulf %130, %132 : vector<6x128xf32>
    %134 = arith.mulf %124, %55 : vector<6x128xf32>
    %cst_43 = arith.constant 1.000000e+00 : f32
    %135 = vector.broadcast %cst_43 : f32 to vector<6x128xf32>
    %136 = arith.subf %135, %133 : vector<6x128xf32>
    %137 = arith.mulf %136, %60 : vector<6x128xf32>
    %138 = arith.addf %134, %137 : vector<6x128xf32>
    %139 = arith.subf %1, %17 : vector<6x128xf32>
    %140 = arith.subf %19, %17 : vector<6x128xf32>
    %141 = tpu.reciprocal %140 : vector<6x128xf32> -> vector<6x128xf32>
    %142 = arith.mulf %139, %141 : vector<6x128xf32>
    %143 = arith.mulf %133, %60 : vector<6x128xf32>
    %cst_44 = arith.constant 1.000000e+00 : f32
    %144 = vector.broadcast %cst_44 : f32 to vector<6x128xf32>
    %145 = arith.subf %144, %142 : vector<6x128xf32>
    %146 = arith.mulf %145, %65 : vector<6x128xf32>
    %147 = arith.addf %143, %146 : vector<6x128xf32>
    %148 = arith.subf %1, %19 : vector<6x128xf32>
    %149 = arith.subf %21, %19 : vector<6x128xf32>
    %150 = tpu.reciprocal %149 : vector<6x128xf32> -> vector<6x128xf32>
    %151 = arith.mulf %148, %150 : vector<6x128xf32>
    %152 = arith.mulf %142, %65 : vector<6x128xf32>
    %cst_45 = arith.constant 1.000000e+00 : f32
    %153 = vector.broadcast %cst_45 : f32 to vector<6x128xf32>
    %154 = arith.subf %153, %151 : vector<6x128xf32>
    %155 = arith.mulf %154, %70 : vector<6x128xf32>
    %156 = arith.addf %152, %155 : vector<6x128xf32>
    %157 = arith.subf %1, %21 : vector<6x128xf32>
    %158 = arith.subf %23, %21 : vector<6x128xf32>
    %159 = tpu.reciprocal %158 : vector<6x128xf32> -> vector<6x128xf32>
    %160 = arith.mulf %157, %159 : vector<6x128xf32>
    %161 = arith.mulf %151, %70 : vector<6x128xf32>
    %cst_46 = arith.constant 1.000000e+00 : f32
    %162 = vector.broadcast %cst_46 : f32 to vector<6x128xf32>
    %163 = arith.subf %162, %160 : vector<6x128xf32>
    %164 = arith.mulf %163, %75 : vector<6x128xf32>
    %165 = arith.addf %161, %164 : vector<6x128xf32>
    %166 = arith.subf %1, %23 : vector<6x128xf32>
    %167 = arith.subf %25, %23 : vector<6x128xf32>
    %168 = tpu.reciprocal %167 : vector<6x128xf32> -> vector<6x128xf32>
    %169 = arith.mulf %166, %168 : vector<6x128xf32>
    %170 = arith.mulf %160, %75 : vector<6x128xf32>
    %cst_47 = arith.constant 1.000000e+00 : f32
    %171 = vector.broadcast %cst_47 : f32 to vector<6x128xf32>
    %172 = arith.subf %171, %169 : vector<6x128xf32>
    %173 = arith.mulf %172, %80 : vector<6x128xf32>
    %174 = arith.addf %170, %173 : vector<6x128xf32>
    %175 = arith.subf %1, %3 : vector<6x128xf32>
    %176 = arith.subf %7, %3 : vector<6x128xf32>
    %177 = tpu.reciprocal %176 : vector<6x128xf32> -> vector<6x128xf32>
    %178 = arith.mulf %175, %177 : vector<6x128xf32>
    %179 = arith.subf %1, %5 : vector<6x128xf32>
    %180 = arith.subf %9, %5 : vector<6x128xf32>
    %181 = tpu.reciprocal %180 : vector<6x128xf32> -> vector<6x128xf32>
    %182 = arith.mulf %179, %181 : vector<6x128xf32>
    %183 = arith.mulf %178, %93 : vector<6x128xf32>
    %cst_48 = arith.constant 1.000000e+00 : f32
    %184 = vector.broadcast %cst_48 : f32 to vector<6x128xf32>
    %185 = arith.subf %184, %182 : vector<6x128xf32>
    %186 = arith.mulf %185, %102 : vector<6x128xf32>
    %187 = arith.addf %183, %186 : vector<6x128xf32>
    %188 = arith.subf %1, %7 : vector<6x128xf32>
    %189 = arith.subf %11, %7 : vector<6x128xf32>
    %190 = tpu.reciprocal %189 : vector<6x128xf32> -> vector<6x128xf32>
    %191 = arith.mulf %188, %190 : vector<6x128xf32>
    %192 = arith.mulf %182, %102 : vector<6x128xf32>
    %cst_49 = arith.constant 1.000000e+00 : f32
    %193 = vector.broadcast %cst_49 : f32 to vector<6x128xf32>
    %194 = arith.subf %193, %191 : vector<6x128xf32>
    %195 = arith.mulf %194, %111 : vector<6x128xf32>
    %196 = arith.addf %192, %195 : vector<6x128xf32>
    %197 = arith.subf %1, %9 : vector<6x128xf32>
    %198 = arith.subf %13, %9 : vector<6x128xf32>
    %199 = tpu.reciprocal %198 : vector<6x128xf32> -> vector<6x128xf32>
    %200 = arith.mulf %197, %199 : vector<6x128xf32>
    %201 = arith.mulf %191, %111 : vector<6x128xf32>
    %cst_50 = arith.constant 1.000000e+00 : f32
    %202 = vector.broadcast %cst_50 : f32 to vector<6x128xf32>
    %203 = arith.subf %202, %200 : vector<6x128xf32>
    %204 = arith.mulf %203, %120 : vector<6x128xf32>
    %205 = arith.addf %201, %204 : vector<6x128xf32>
    %206 = arith.subf %1, %11 : vector<6x128xf32>
    %207 = arith.subf %15, %11 : vector<6x128xf32>
    %208 = tpu.reciprocal %207 : vector<6x128xf32> -> vector<6x128xf32>
    %209 = arith.mulf %206, %208 : vector<6x128xf32>
    %210 = arith.mulf %200, %120 : vector<6x128xf32>
    %cst_51 = arith.constant 1.000000e+00 : f32
    %211 = vector.broadcast %cst_51 : f32 to vector<6x128xf32>
    %212 = arith.subf %211, %209 : vector<6x128xf32>
    %213 = arith.mulf %212, %129 : vector<6x128xf32>
    %214 = arith.addf %210, %213 : vector<6x128xf32>
    %215 = arith.subf %1, %13 : vector<6x128xf32>
    %216 = arith.subf %17, %13 : vector<6x128xf32>
    %217 = tpu.reciprocal %216 : vector<6x128xf32> -> vector<6x128xf32>
    %218 = arith.mulf %215, %217 : vector<6x128xf32>
    %219 = arith.mulf %209, %129 : vector<6x128xf32>
    %cst_52 = arith.constant 1.000000e+00 : f32
    %220 = vector.broadcast %cst_52 : f32 to vector<6x128xf32>
    %221 = arith.subf %220, %218 : vector<6x128xf32>
    %222 = arith.mulf %221, %138 : vector<6x128xf32>
    %223 = arith.addf %219, %222 : vector<6x128xf32>
    %224 = arith.subf %1, %15 : vector<6x128xf32>
    %225 = arith.subf %19, %15 : vector<6x128xf32>
    %226 = tpu.reciprocal %225 : vector<6x128xf32> -> vector<6x128xf32>
    %227 = arith.mulf %224, %226 : vector<6x128xf32>
    %228 = arith.mulf %218, %138 : vector<6x128xf32>
    %cst_53 = arith.constant 1.000000e+00 : f32
    %229 = vector.broadcast %cst_53 : f32 to vector<6x128xf32>
    %230 = arith.subf %229, %227 : vector<6x128xf32>
    %231 = arith.mulf %230, %147 : vector<6x128xf32>
    %232 = arith.addf %228, %231 : vector<6x128xf32>
    %233 = arith.subf %1, %17 : vector<6x128xf32>
    %234 = arith.subf %21, %17 : vector<6x128xf32>
    %235 = tpu.reciprocal %234 : vector<6x128xf32> -> vector<6x128xf32>
    %236 = arith.mulf %233, %235 : vector<6x128xf32>
    %237 = arith.mulf %227, %147 : vector<6x128xf32>
    %cst_54 = arith.constant 1.000000e+00 : f32
    %238 = vector.broadcast %cst_54 : f32 to vector<6x128xf32>
    %239 = arith.subf %238, %236 : vector<6x128xf32>
    %240 = arith.mulf %239, %156 : vector<6x128xf32>
    %241 = arith.addf %237, %240 : vector<6x128xf32>
    %242 = arith.subf %1, %19 : vector<6x128xf32>
    %243 = arith.subf %23, %19 : vector<6x128xf32>
    %244 = tpu.reciprocal %243 : vector<6x128xf32> -> vector<6x128xf32>
    %245 = arith.mulf %242, %244 : vector<6x128xf32>
    %246 = arith.mulf %236, %156 : vector<6x128xf32>
    %cst_55 = arith.constant 1.000000e+00 : f32
    %247 = vector.broadcast %cst_55 : f32 to vector<6x128xf32>
    %248 = arith.subf %247, %245 : vector<6x128xf32>
    %249 = arith.mulf %248, %165 : vector<6x128xf32>
    %250 = arith.addf %246, %249 : vector<6x128xf32>
    %251 = arith.subf %1, %21 : vector<6x128xf32>
    %252 = arith.subf %25, %21 : vector<6x128xf32>
    %253 = tpu.reciprocal %252 : vector<6x128xf32> -> vector<6x128xf32>
    %254 = arith.mulf %251, %253 : vector<6x128xf32>
    %255 = arith.mulf %245, %165 : vector<6x128xf32>
    %cst_56 = arith.constant 1.000000e+00 : f32
    %256 = vector.broadcast %cst_56 : f32 to vector<6x128xf32>
    %257 = arith.subf %256, %254 : vector<6x128xf32>
    %258 = arith.mulf %257, %174 : vector<6x128xf32>
    %259 = arith.addf %255, %258 : vector<6x128xf32>
    %260 = arith.subf %1, %3 : vector<6x128xf32>
    %261 = arith.subf %9, %3 : vector<6x128xf32>
    %262 = tpu.reciprocal %261 : vector<6x128xf32> -> vector<6x128xf32>
    %263 = arith.mulf %260, %262 : vector<6x128xf32>
    %264 = arith.subf %1, %5 : vector<6x128xf32>
    %265 = arith.subf %11, %5 : vector<6x128xf32>
    %266 = tpu.reciprocal %265 : vector<6x128xf32> -> vector<6x128xf32>
    %267 = arith.mulf %264, %266 : vector<6x128xf32>
    %268 = arith.mulf %263, %187 : vector<6x128xf32>
    %cst_57 = arith.constant 1.000000e+00 : f32
    %269 = vector.broadcast %cst_57 : f32 to vector<6x128xf32>
    %270 = arith.subf %269, %267 : vector<6x128xf32>
    %271 = arith.mulf %270, %196 : vector<6x128xf32>
    %272 = arith.addf %268, %271 : vector<6x128xf32>
    %273 = arith.subf %1, %7 : vector<6x128xf32>
    %274 = arith.subf %13, %7 : vector<6x128xf32>
    %275 = tpu.reciprocal %274 : vector<6x128xf32> -> vector<6x128xf32>
    %276 = arith.mulf %273, %275 : vector<6x128xf32>
    %277 = arith.mulf %267, %196 : vector<6x128xf32>
    %cst_58 = arith.constant 1.000000e+00 : f32
    %278 = vector.broadcast %cst_58 : f32 to vector<6x128xf32>
    %279 = arith.subf %278, %276 : vector<6x128xf32>
    %280 = arith.mulf %279, %205 : vector<6x128xf32>
    %281 = arith.addf %277, %280 : vector<6x128xf32>
    %282 = arith.subf %1, %9 : vector<6x128xf32>
    %283 = arith.subf %15, %9 : vector<6x128xf32>
    %284 = tpu.reciprocal %283 : vector<6x128xf32> -> vector<6x128xf32>
    %285 = arith.mulf %282, %284 : vector<6x128xf32>
    %286 = arith.mulf %276, %205 : vector<6x128xf32>
    %cst_59 = arith.constant 1.000000e+00 : f32
    %287 = vector.broadcast %cst_59 : f32 to vector<6x128xf32>
    %288 = arith.subf %287, %285 : vector<6x128xf32>
    %289 = arith.mulf %288, %214 : vector<6x128xf32>
    %290 = arith.addf %286, %289 : vector<6x128xf32>
    %291 = arith.subf %1, %11 : vector<6x128xf32>
    %292 = arith.subf %17, %11 : vector<6x128xf32>
    %293 = tpu.reciprocal %292 : vector<6x128xf32> -> vector<6x128xf32>
    %294 = arith.mulf %291, %293 : vector<6x128xf32>
    %295 = arith.mulf %285, %214 : vector<6x128xf32>
    %cst_60 = arith.constant 1.000000e+00 : f32
    %296 = vector.broadcast %cst_60 : f32 to vector<6x128xf32>
    %297 = arith.subf %296, %294 : vector<6x128xf32>
    %298 = arith.mulf %297, %223 : vector<6x128xf32>
    %299 = arith.addf %295, %298 : vector<6x128xf32>
    %300 = arith.subf %1, %13 : vector<6x128xf32>
    %301 = arith.subf %19, %13 : vector<6x128xf32>
    %302 = tpu.reciprocal %301 : vector<6x128xf32> -> vector<6x128xf32>
    %303 = arith.mulf %300, %302 : vector<6x128xf32>
    %304 = arith.mulf %294, %223 : vector<6x128xf32>
    %cst_61 = arith.constant 1.000000e+00 : f32
    %305 = vector.broadcast %cst_61 : f32 to vector<6x128xf32>
    %306 = arith.subf %305, %303 : vector<6x128xf32>
    %307 = arith.mulf %306, %232 : vector<6x128xf32>
    %308 = arith.addf %304, %307 : vector<6x128xf32>
    %309 = arith.subf %1, %15 : vector<6x128xf32>
    %310 = arith.subf %21, %15 : vector<6x128xf32>
    %311 = tpu.reciprocal %310 : vector<6x128xf32> -> vector<6x128xf32>
    %312 = arith.mulf %309, %311 : vector<6x128xf32>
    %313 = arith.mulf %303, %232 : vector<6x128xf32>
    %cst_62 = arith.constant 1.000000e+00 : f32
    %314 = vector.broadcast %cst_62 : f32 to vector<6x128xf32>
    %315 = arith.subf %314, %312 : vector<6x128xf32>
    %316 = arith.mulf %315, %241 : vector<6x128xf32>
    %317 = arith.addf %313, %316 : vector<6x128xf32>
    %318 = arith.subf %1, %17 : vector<6x128xf32>
    %319 = arith.subf %23, %17 : vector<6x128xf32>
    %320 = tpu.reciprocal %319 : vector<6x128xf32> -> vector<6x128xf32>
    %321 = arith.mulf %318, %320 : vector<6x128xf32>
    %322 = arith.mulf %312, %241 : vector<6x128xf32>
    %cst_63 = arith.constant 1.000000e+00 : f32
    %323 = vector.broadcast %cst_63 : f32 to vector<6x128xf32>
    %324 = arith.subf %323, %321 : vector<6x128xf32>
    %325 = arith.mulf %324, %250 : vector<6x128xf32>
    %326 = arith.addf %322, %325 : vector<6x128xf32>
    %327 = arith.subf %1, %19 : vector<6x128xf32>
    %328 = arith.subf %25, %19 : vector<6x128xf32>
    %329 = tpu.reciprocal %328 : vector<6x128xf32> -> vector<6x128xf32>
    %330 = arith.mulf %327, %329 : vector<6x128xf32>
    %331 = arith.mulf %321, %250 : vector<6x128xf32>
    %cst_64 = arith.constant 1.000000e+00 : f32
    %332 = vector.broadcast %cst_64 : f32 to vector<6x128xf32>
    %333 = arith.subf %332, %330 : vector<6x128xf32>
    %334 = arith.mulf %333, %259 : vector<6x128xf32>
    %335 = arith.addf %331, %334 : vector<6x128xf32>
    %c0_65 = arith.constant 0 : index
    %c12 = arith.constant 12 : index
    %c0_66 = arith.constant 0 : index
    %c0_67 = arith.constant 0 : index
    %336 = vector.load %arg2[%c0_65, %c12, %c0_66, %c0_67] : memref<1x23x6x256xf32, #tpu.memory_space<vmem>>, vector<1x1x6x128xf32>
    %337 = vector.shape_cast %336 : vector<1x1x6x128xf32> to vector<6x128xf32>
    %338 = arith.mulf %337, %272 : vector<6x128xf32>
    %c0_68 = arith.constant 0 : index
    %c13 = arith.constant 13 : index
    %c0_69 = arith.constant 0 : index
    %c0_70 = arith.constant 0 : index
    %339 = vector.load %arg2[%c0_68, %c13, %c0_69, %c0_70] : memref<1x23x6x256xf32, #tpu.memory_space<vmem>>, vector<1x1x6x128xf32>
    %340 = vector.shape_cast %339 : vector<1x1x6x128xf32> to vector<6x128xf32>
    %341 = arith.mulf %340, %281 : vector<6x128xf32>
    %342 = arith.addf %338, %341 : vector<6x128xf32>
    %c0_71 = arith.constant 0 : index
    %c14 = arith.constant 14 : index
    %c0_72 = arith.constant 0 : index
    %c0_73 = arith.constant 0 : index
    %343 = vector.load %arg2[%c0_71, %c14, %c0_72, %c0_73] : memref<1x23x6x256xf32, #tpu.memory_space<vmem>>, vector<1x1x6x128xf32>
    %344 = vector.shape_cast %343 : vector<1x1x6x128xf32> to vector<6x128xf32>
    %345 = arith.mulf %344, %290 : vector<6x128xf32>
    %346 = arith.addf %342, %345 : vector<6x128xf32>
    %c0_74 = arith.constant 0 : index
    %c15 = arith.constant 15 : index
    %c0_75 = arith.constant 0 : index
    %c0_76 = arith.constant 0 : index
    %347 = vector.load %arg2[%c0_74, %c15, %c0_75, %c0_76] : memref<1x23x6x256xf32, #tpu.memory_space<vmem>>, vector<1x1x6x128xf32>
    %348 = vector.shape_cast %347 : vector<1x1x6x128xf32> to vector<6x128xf32>
    %349 = arith.mulf %348, %299 : vector<6x128xf32>
    %350 = arith.addf %346, %349 : vector<6x128xf32>
    %c0_77 = arith.constant 0 : index
    %c16 = arith.constant 16 : index
    %c0_78 = arith.constant 0 : index
    %c0_79 = arith.constant 0 : index
    %351 = vector.load %arg2[%c0_77, %c16, %c0_78, %c0_79] : memref<1x23x6x256xf32, #tpu.memory_space<vmem>>, vector<1x1x6x128xf32>
    %352 = vector.shape_cast %351 : vector<1x1x6x128xf32> to vector<6x128xf32>
    %353 = arith.mulf %352, %308 : vector<6x128xf32>
    %354 = arith.addf %350, %353 : vector<6x128xf32>
    %c0_80 = arith.constant 0 : index
    %c17 = arith.constant 17 : index
    %c0_81 = arith.constant 0 : index
    %c0_82 = arith.constant 0 : index
    %355 = vector.load %arg2[%c0_80, %c17, %c0_81, %c0_82] : memref<1x23x6x256xf32, #tpu.memory_space<vmem>>, vector<1x1x6x128xf32>
    %356 = vector.shape_cast %355 : vector<1x1x6x128xf32> to vector<6x128xf32>
    %357 = arith.mulf %356, %317 : vector<6x128xf32>
    %358 = arith.addf %354, %357 : vector<6x128xf32>
    %c0_83 = arith.constant 0 : index
    %c18 = arith.constant 18 : index
    %c0_84 = arith.constant 0 : index
    %c0_85 = arith.constant 0 : index
    %359 = vector.load %arg2[%c0_83, %c18, %c0_84, %c0_85] : memref<1x23x6x256xf32, #tpu.memory_space<vmem>>, vector<1x1x6x128xf32>
    %360 = vector.shape_cast %359 : vector<1x1x6x128xf32> to vector<6x128xf32>
    %361 = arith.mulf %360, %326 : vector<6x128xf32>
    %362 = arith.addf %358, %361 : vector<6x128xf32>
    %c0_86 = arith.constant 0 : index
    %c19 = arith.constant 19 : index
    %c0_87 = arith.constant 0 : index
    %c0_88 = arith.constant 0 : index
    %363 = vector.load %arg2[%c0_86, %c19, %c0_87, %c0_88] : memref<1x23x6x256xf32, #tpu.memory_space<vmem>>, vector<1x1x6x128xf32>
    %364 = vector.shape_cast %363 : vector<1x1x6x128xf32> to vector<6x128xf32>
    %365 = arith.mulf %364, %335 : vector<6x128xf32>
    %366 = arith.addf %362, %365 : vector<6x128xf32>
    %367 = arith.negf %1 : vector<6x128xf32>
    %368 = math.exp %367 : vector<6x128xf32>
    %cst_89 = arith.constant 1.000000e+00 : f32
    %369 = vector.broadcast %cst_89 : f32 to vector<6x128xf32>
    %370 = arith.addf %369, %368 : vector<6x128xf32>
    %371 = arith.divf %369, %370 : vector<6x128xf32>
    %372 = arith.mulf %1, %371 : vector<6x128xf32>
    %c0_90 = arith.constant 0 : index
    %c22 = arith.constant 22 : index
    %c0_91 = arith.constant 0 : index
    %c0_92 = arith.constant 0 : index
    %373 = vector.load %arg2[%c0_90, %c22, %c0_91, %c0_92] : memref<1x23x6x256xf32, #tpu.memory_space<vmem>>, vector<1x1x6x128xf32>
    %374 = vector.shape_cast %373 : vector<1x1x6x128xf32> to vector<6x128xf32>
    %c0_93 = arith.constant 0 : index
    %c20 = arith.constant 20 : index
    %c0_94 = arith.constant 0 : index
    %c0_95 = arith.constant 0 : index
    %375 = vector.load %arg2[%c0_93, %c20, %c0_94, %c0_95] : memref<1x23x6x256xf32, #tpu.memory_space<vmem>>, vector<1x1x6x128xf32>
    %376 = vector.shape_cast %375 : vector<1x1x6x128xf32> to vector<6x128xf32>
    %377 = arith.mulf %376, %372 : vector<6x128xf32>
    %c0_96 = arith.constant 0 : index
    %c21 = arith.constant 21 : index
    %c0_97 = arith.constant 0 : index
    %c0_98 = arith.constant 0 : index
    %378 = vector.load %arg2[%c0_96, %c21, %c0_97, %c0_98] : memref<1x23x6x256xf32, #tpu.memory_space<vmem>>, vector<1x1x6x128xf32>
    %379 = vector.shape_cast %378 : vector<1x1x6x128xf32> to vector<6x128xf32>
    %380 = arith.mulf %379, %366 : vector<6x128xf32>
    %381 = arith.addf %377, %380 : vector<6x128xf32>
    %382 = arith.mulf %374, %381 : vector<6x128xf32>
    %383 = vector.extract_strided_slice %382 {offsets = [0, 0], sizes = [2, 128], strides = [1, 1]} : vector<6x128xf32> to vector<2x128xf32>
    %384 = vector.extract_strided_slice %382 {offsets = [2, 0], sizes = [2, 128], strides = [1, 1]} : vector<6x128xf32> to vector<2x128xf32>
    %385 = arith.addf %383, %384 : vector<2x128xf32>
    %386 = vector.extract_strided_slice %382 {offsets = [4, 0], sizes = [2, 128], strides = [1, 1]} : vector<6x128xf32> to vector<2x128xf32>
    %387 = arith.addf %385, %386 : vector<2x128xf32>
    %c0_99 = arith.constant 0 : index
    %c0_100 = arith.constant 0 : index
    %388 = vector.load %arg3[%c0_99, %c0_100] : memref<2x256xf32, #tpu.memory_space<vmem>>, vector<2x128xf32>
    tpu.vector_store %arg3[%c0_99, %c0_100], %387 {strides = array<i32>} : memref<2x256xf32, #tpu.memory_space<vmem>>, vector<2x128xf32>,
    %c0_101 = arith.constant 0 : index
    %c0_102 = arith.constant 0 : index
    %c128 = arith.constant 128 : index
    %389 = vector.load %arg1[%c0_101, %c0_102, %c128] : memref<1x6x256xf32, #tpu.memory_space<vmem>>, vector<1x6x128xf32>
    %390 = vector.shape_cast %389 : vector<1x6x128xf32> to vector<6x128xf32>
    %c0_103 = arith.constant 0 : index
    %c0_104 = arith.constant 0 : index
    %c0_105 = arith.constant 0 : index
    %c128_106 = arith.constant 128 : index
    %391 = vector.load %arg2[%c0_103, %c0_104, %c0_105, %c128_106] : memref<1x23x6x256xf32, #tpu.memory_space<vmem>>, vector<1x1x6x128xf32>
    %392 = vector.shape_cast %391 : vector<1x1x6x128xf32> to vector<6x128xf32>
    %c0_107 = arith.constant 0 : index
    %c1_108 = arith.constant 1 : index
    %c0_109 = arith.constant 0 : index
    %c128_110 = arith.constant 128 : index
    %393 = vector.load %arg2[%c0_107, %c1_108, %c0_109, %c128_110] : memref<1x23x6x256xf32, #tpu.memory_space<vmem>>, vector<1x1x6x128xf32>
    %394 = vector.shape_cast %393 : vector<1x1x6x128xf32> to vector<6x128xf32>
    %c0_111 = arith.constant 0 : index
    %c2_112 = arith.constant 2 : index
    %c0_113 = arith.constant 0 : index
    %c128_114 = arith.constant 128 : index
    %395 = vector.load %arg2[%c0_111, %c2_112, %c0_113, %c128_114] : memref<1x23x6x256xf32, #tpu.memory_space<vmem>>, vector<1x1x6x128xf32>
    %396 = vector.shape_cast %395 : vector<1x1x6x128xf32> to vector<6x128xf32>
    %c0_115 = arith.constant 0 : index
    %c3_116 = arith.constant 3 : index
    %c0_117 = arith.constant 0 : index
    %c128_118 = arith.constant 128 : index
    %397 = vector.load %arg2[%c0_115, %c3_116, %c0_117, %c128_118] : memref<1x23x6x256xf32, #tpu.memory_space<vmem>>, vector<1x1x6x128xf32>
    %398 = vector.shape_cast %397 : vector<1x1x6x128xf32> to vector<6x128xf32>
    %c0_119 = arith.constant 0 : index
    %c4_120 = arith.constant 4 : index
    %c0_121 = arith.constant 0 : index
    %c128_122 = arith.constant 128 : index
    %399 = vector.load %arg2[%c0_119, %c4_120, %c0_121, %c128_122] : memref<1x23x6x256xf32, #tpu.memory_space<vmem>>, vector<1x1x6x128xf32>
    %400 = vector.shape_cast %399 : vector<1x1x6x128xf32> to vector<6x128xf32>
    %c0_123 = arith.constant 0 : index
    %c5_124 = arith.constant 5 : index
    %c0_125 = arith.constant 0 : index
    %c128_126 = arith.constant 128 : index
    %401 = vector.load %arg2[%c0_123, %c5_124, %c0_125, %c128_126] : memref<1x23x6x256xf32, #tpu.memory_space<vmem>>, vector<1x1x6x128xf32>
    %402 = vector.shape_cast %401 : vector<1x1x6x128xf32> to vector<6x128xf32>
    %c0_127 = arith.constant 0 : index
    %c6_128 = arith.constant 6 : index
    %c0_129 = arith.constant 0 : index
    %c128_130 = arith.constant 128 : index
    %403 = vector.load %arg2[%c0_127, %c6_128, %c0_129, %c128_130] : memref<1x23x6x256xf32, #tpu.memory_space<vmem>>, vector<1x1x6x128xf32>
    %404 = vector.shape_cast %403 : vector<1x1x6x128xf32> to vector<6x128xf32>
    %c0_131 = arith.constant 0 : index
    %c7_132 = arith.constant 7 : index
    %c0_133 = arith.constant 0 : index
    %c128_134 = arith.constant 128 : index
    %405 = vector.load %arg2[%c0_131, %c7_132, %c0_133, %c128_134] : memref<1x23x6x256xf32, #tpu.memory_space<vmem>>, vector<1x1x6x128xf32>
    %406 = vector.shape_cast %405 : vector<1x1x6x128xf32> to vector<6x128xf32>
    %c0_135 = arith.constant 0 : index
    %c8_136 = arith.constant 8 : index
    %c0_137 = arith.constant 0 : index
    %c128_138 = arith.constant 128 : index
    %407 = vector.load %arg2[%c0_135, %c8_136, %c0_137, %c128_138] : memref<1x23x6x256xf32, #tpu.memory_space<vmem>>, vector<1x1x6x128xf32>
    %408 = vector.shape_cast %407 : vector<1x1x6x128xf32> to vector<6x128xf32>
    %c0_139 = arith.constant 0 : index
    %c9_140 = arith.constant 9 : index
    %c0_141 = arith.constant 0 : index
    %c128_142 = arith.constant 128 : index
    %409 = vector.load %arg2[%c0_139, %c9_140, %c0_141, %c128_142] : memref<1x23x6x256xf32, #tpu.memory_space<vmem>>, vector<1x1x6x128xf32>
    %410 = vector.shape_cast %409 : vector<1x1x6x128xf32> to vector<6x128xf32>
    %c0_143 = arith.constant 0 : index
    %c10_144 = arith.constant 10 : index
    %c0_145 = arith.constant 0 : index
    %c128_146 = arith.constant 128 : index
    %411 = vector.load %arg2[%c0_143, %c10_144, %c0_145, %c128_146] : memref<1x23x6x256xf32, #tpu.memory_space<vmem>>, vector<1x1x6x128xf32>
    %412 = vector.shape_cast %411 : vector<1x1x6x128xf32> to vector<6x128xf32>
    %c0_147 = arith.constant 0 : index
    %c11_148 = arith.constant 11 : index
    %c0_149 = arith.constant 0 : index
    %c128_150 = arith.constant 128 : index
    %413 = vector.load %arg2[%c0_147, %c11_148, %c0_149, %c128_150] : memref<1x23x6x256xf32, #tpu.memory_space<vmem>>, vector<1x1x6x128xf32>
    %414 = vector.shape_cast %413 : vector<1x1x6x128xf32> to vector<6x128xf32>
    %415 = arith.cmpf oge, %390, %392 : vector<6x128xf32>
    %416 = arith.cmpf olt, %390, %394 : vector<6x128xf32>
    %417 = arith.andi %415, %416 : vector<6x128xi1>
    %418 = arith.extui %417 : vector<6x128xi1> to vector<6x128xi32>
    %419 = arith.sitofp %418 : vector<6x128xi32> to vector<6x128xf32>
    %420 = arith.cmpf oge, %390, %394 : vector<6x128xf32>
    %421 = arith.cmpf olt, %390, %396 : vector<6x128xf32>
    %422 = arith.andi %420, %421 : vector<6x128xi1>
    %423 = arith.extui %422 : vector<6x128xi1> to vector<6x128xi32>
    %424 = arith.sitofp %423 : vector<6x128xi32> to vector<6x128xf32>
    %425 = arith.cmpf oge, %390, %396 : vector<6x128xf32>
    %426 = arith.cmpf olt, %390, %398 : vector<6x128xf32>
    %427 = arith.andi %425, %426 : vector<6x128xi1>
    %428 = arith.extui %427 : vector<6x128xi1> to vector<6x128xi32>
    %429 = arith.sitofp %428 : vector<6x128xi32> to vector<6x128xf32>
    %430 = arith.cmpf oge, %390, %398 : vector<6x128xf32>
    %431 = arith.cmpf olt, %390, %400 : vector<6x128xf32>
    %432 = arith.andi %430, %431 : vector<6x128xi1>
    %433 = arith.extui %432 : vector<6x128xi1> to vector<6x128xi32>
    %434 = arith.sitofp %433 : vector<6x128xi32> to vector<6x128xf32>
    %435 = arith.cmpf oge, %390, %400 : vector<6x128xf32>
    %436 = arith.cmpf olt, %390, %402 : vector<6x128xf32>
    %437 = arith.andi %435, %436 : vector<6x128xi1>
    %438 = arith.extui %437 : vector<6x128xi1> to vector<6x128xi32>
    %439 = arith.sitofp %438 : vector<6x128xi32> to vector<6x128xf32>
    %440 = arith.cmpf oge, %390, %402 : vector<6x128xf32>
    %441 = arith.cmpf olt, %390, %404 : vector<6x128xf32>
    %442 = arith.andi %440, %441 : vector<6x128xi1>
    %443 = arith.extui %442 : vector<6x128xi1> to vector<6x128xi32>
    %444 = arith.sitofp %443 : vector<6x128xi32> to vector<6x128xf32>
    %445 = arith.cmpf oge, %390, %404 : vector<6x128xf32>
    %446 = arith.cmpf olt, %390, %406 : vector<6x128xf32>
    %447 = arith.andi %445, %446 : vector<6x128xi1>
    %448 = arith.extui %447 : vector<6x128xi1> to vector<6x128xi32>
    %449 = arith.sitofp %448 : vector<6x128xi32> to vector<6x128xf32>
    %450 = arith.cmpf oge, %390, %406 : vector<6x128xf32>
    %451 = arith.cmpf olt, %390, %408 : vector<6x128xf32>
    %452 = arith.andi %450, %451 : vector<6x128xi1>
    %453 = arith.extui %452 : vector<6x128xi1> to vector<6x128xi32>
    %454 = arith.sitofp %453 : vector<6x128xi32> to vector<6x128xf32>
    %455 = arith.cmpf oge, %390, %408 : vector<6x128xf32>
    %456 = arith.cmpf olt, %390, %410 : vector<6x128xf32>
    %457 = arith.andi %455, %456 : vector<6x128xi1>
    %458 = arith.extui %457 : vector<6x128xi1> to vector<6x128xi32>
    %459 = arith.sitofp %458 : vector<6x128xi32> to vector<6x128xf32>
    %460 = arith.cmpf oge, %390, %410 : vector<6x128xf32>
    %461 = arith.cmpf olt, %390, %412 : vector<6x128xf32>
    %462 = arith.andi %460, %461 : vector<6x128xi1>
    %463 = arith.extui %462 : vector<6x128xi1> to vector<6x128xi32>
    %464 = arith.sitofp %463 : vector<6x128xi32> to vector<6x128xf32>
    %465 = arith.cmpf oge, %390, %412 : vector<6x128xf32>
    %466 = arith.cmpf olt, %390, %414 : vector<6x128xf32>
    %467 = arith.andi %465, %466 : vector<6x128xi1>
    %468 = arith.extui %467 : vector<6x128xi1> to vector<6x128xi32>
    %469 = arith.sitofp %468 : vector<6x128xi32> to vector<6x128xf32>
    %470 = arith.subf %390, %392 : vector<6x128xf32>
    %471 = arith.subf %394, %392 : vector<6x128xf32>
    %472 = tpu.reciprocal %471 : vector<6x128xf32> -> vector<6x128xf32>
    %473 = arith.mulf %470, %472 : vector<6x128xf32>
    %474 = arith.subf %390, %394 : vector<6x128xf32>
    %475 = arith.subf %396, %394 : vector<6x128xf32>
    %476 = tpu.reciprocal %475 : vector<6x128xf32> -> vector<6x128xf32>
    %477 = arith.mulf %474, %476 : vector<6x128xf32>
    %478 = arith.mulf %473, %419 : vector<6x128xf32>
    %cst_151 = arith.constant 1.000000e+00 : f32
    %479 = vector.broadcast %cst_151 : f32 to vector<6x128xf32>
    %480 = arith.subf %479, %477 : vector<6x128xf32>
    %481 = arith.mulf %480, %424 : vector<6x128xf32>
    %482 = arith.addf %478, %481 : vector<6x128xf32>
    %483 = arith.subf %390, %396 : vector<6x128xf32>
    %484 = arith.subf %398, %396 : vector<6x128xf32>
    %485 = tpu.reciprocal %484 : vector<6x128xf32> -> vector<6x128xf32>
    %486 = arith.mulf %483, %485 : vector<6x128xf32>
    %487 = arith.mulf %477, %424 : vector<6x128xf32>
    %cst_152 = arith.constant 1.000000e+00 : f32
    %488 = vector.broadcast %cst_152 : f32 to vector<6x128xf32>
    %489 = arith.subf %488, %486 : vector<6x128xf32>
    %490 = arith.mulf %489, %429 : vector<6x128xf32>
    %491 = arith.addf %487, %490 : vector<6x128xf32>
    %492 = arith.subf %390, %398 : vector<6x128xf32>
    %493 = arith.subf %400, %398 : vector<6x128xf32>
    %494 = tpu.reciprocal %493 : vector<6x128xf32> -> vector<6x128xf32>
    %495 = arith.mulf %492, %494 : vector<6x128xf32>
    %496 = arith.mulf %486, %429 : vector<6x128xf32>
    %cst_153 = arith.constant 1.000000e+00 : f32
    %497 = vector.broadcast %cst_153 : f32 to vector<6x128xf32>
    %498 = arith.subf %497, %495 : vector<6x128xf32>
    %499 = arith.mulf %498, %434 : vector<6x128xf32>
    %500 = arith.addf %496, %499 : vector<6x128xf32>
    %501 = arith.subf %390, %400 : vector<6x128xf32>
    %502 = arith.subf %402, %400 : vector<6x128xf32>
    %503 = tpu.reciprocal %502 : vector<6x128xf32> -> vector<6x128xf32>
    %504 = arith.mulf %501, %503 : vector<6x128xf32>
    %505 = arith.mulf %495, %434 : vector<6x128xf32>
    %cst_154 = arith.constant 1.000000e+00 : f32
    %506 = vector.broadcast %cst_154 : f32 to vector<6x128xf32>
    %507 = arith.subf %506, %504 : vector<6x128xf32>
    %508 = arith.mulf %507, %439 : vector<6x128xf32>
    %509 = arith.addf %505, %508 : vector<6x128xf32>
    %510 = arith.subf %390, %402 : vector<6x128xf32>
    %511 = arith.subf %404, %402 : vector<6x128xf32>
    %512 = tpu.reciprocal %511 : vector<6x128xf32> -> vector<6x128xf32>
    %513 = arith.mulf %510, %512 : vector<6x128xf32>
    %514 = arith.mulf %504, %439 : vector<6x128xf32>
    %cst_155 = arith.constant 1.000000e+00 : f32
    %515 = vector.broadcast %cst_155 : f32 to vector<6x128xf32>
    %516 = arith.subf %515, %513 : vector<6x128xf32>
    %517 = arith.mulf %516, %444 : vector<6x128xf32>
    %518 = arith.addf %514, %517 : vector<6x128xf32>
    %519 = arith.subf %390, %404 : vector<6x128xf32>
    %520 = arith.subf %406, %404 : vector<6x128xf32>
    %521 = tpu.reciprocal %520 : vector<6x128xf32> -> vector<6x128xf32>
    %522 = arith.mulf %519, %521 : vector<6x128xf32>
    %523 = arith.mulf %513, %444 : vector<6x128xf32>
    %cst_156 = arith.constant 1.000000e+00 : f32
    %524 = vector.broadcast %cst_156 : f32 to vector<6x128xf32>
    %525 = arith.subf %524, %522 : vector<6x128xf32>
    %526 = arith.mulf %525, %449 : vector<6x128xf32>
    %527 = arith.addf %523, %526 : vector<6x128xf32>
    %528 = arith.subf %390, %406 : vector<6x128xf32>
    %529 = arith.subf %408, %406 : vector<6x128xf32>
    %530 = tpu.reciprocal %529 : vector<6x128xf32> -> vector<6x128xf32>
    %531 = arith.mulf %528, %530 : vector<6x128xf32>
    %532 = arith.mulf %522, %449 : vector<6x128xf32>
    %cst_157 = arith.constant 1.000000e+00 : f32
    %533 = vector.broadcast %cst_157 : f32 to vector<6x128xf32>
    %534 = arith.subf %533, %531 : vector<6x128xf32>
    %535 = arith.mulf %534, %454 : vector<6x128xf32>
    %536 = arith.addf %532, %535 : vector<6x128xf32>
    %537 = arith.subf %390, %408 : vector<6x128xf32>
    %538 = arith.subf %410, %408 : vector<6x128xf32>
    %539 = tpu.reciprocal %538 : vector<6x128xf32> -> vector<6x128xf32>
    %540 = arith.mulf %537, %539 : vector<6x128xf32>
    %541 = arith.mulf %531, %454 : vector<6x128xf32>
    %cst_158 = arith.constant 1.000000e+00 : f32
    %542 = vector.broadcast %cst_158 : f32 to vector<6x128xf32>
    %543 = arith.subf %542, %540 : vector<6x128xf32>
    %544 = arith.mulf %543, %459 : vector<6x128xf32>
    %545 = arith.addf %541, %544 : vector<6x128xf32>
    %546 = arith.subf %390, %410 : vector<6x128xf32>
    %547 = arith.subf %412, %410 : vector<6x128xf32>
    %548 = tpu.reciprocal %547 : vector<6x128xf32> -> vector<6x128xf32>
    %549 = arith.mulf %546, %548 : vector<6x128xf32>
    %550 = arith.mulf %540, %459 : vector<6x128xf32>
    %cst_159 = arith.constant 1.000000e+00 : f32
    %551 = vector.broadcast %cst_159 : f32 to vector<6x128xf32>
    %552 = arith.subf %551, %549 : vector<6x128xf32>
    %553 = arith.mulf %552, %464 : vector<6x128xf32>
    %554 = arith.addf %550, %553 : vector<6x128xf32>
    %555 = arith.subf %390, %412 : vector<6x128xf32>
    %556 = arith.subf %414, %412 : vector<6x128xf32>
    %557 = tpu.reciprocal %556 : vector<6x128xf32> -> vector<6x128xf32>
    %558 = arith.mulf %555, %557 : vector<6x128xf32>
    %559 = arith.mulf %549, %464 : vector<6x128xf32>
    %cst_160 = arith.constant 1.000000e+00 : f32
    %560 = vector.broadcast %cst_160 : f32 to vector<6x128xf32>
    %561 = arith.subf %560, %558 : vector<6x128xf32>
    %562 = arith.mulf %561, %469 : vector<6x128xf32>
    %563 = arith.addf %559, %562 : vector<6x128xf32>
    %564 = arith.subf %390, %392 : vector<6x128xf32>
    %565 = arith.subf %396, %392 : vector<6x128xf32>
    %566 = tpu.reciprocal %565 : vector<6x128xf32> -> vector<6x128xf32>
    %567 = arith.mulf %564, %566 : vector<6x128xf32>
    %568 = arith.subf %390, %394 : vector<6x128xf32>
    %569 = arith.subf %398, %394 : vector<6x128xf32>
    %570 = tpu.reciprocal %569 : vector<6x128xf32> -> vector<6x128xf32>
    %571 = arith.mulf %568, %570 : vector<6x128xf32>
    %572 = arith.mulf %567, %482 : vector<6x128xf32>
    %cst_161 = arith.constant 1.000000e+00 : f32
    %573 = vector.broadcast %cst_161 : f32 to vector<6x128xf32>
    %574 = arith.subf %573, %571 : vector<6x128xf32>
    %575 = arith.mulf %574, %491 : vector<6x128xf32>
    %576 = arith.addf %572, %575 : vector<6x128xf32>
    %577 = arith.subf %390, %396 : vector<6x128xf32>
    %578 = arith.subf %400, %396 : vector<6x128xf32>
    %579 = tpu.reciprocal %578 : vector<6x128xf32> -> vector<6x128xf32>
    %580 = arith.mulf %577, %579 : vector<6x128xf32>
    %581 = arith.mulf %571, %491 : vector<6x128xf32>
    %cst_162 = arith.constant 1.000000e+00 : f32
    %582 = vector.broadcast %cst_162 : f32 to vector<6x128xf32>
    %583 = arith.subf %582, %580 : vector<6x128xf32>
    %584 = arith.mulf %583, %500 : vector<6x128xf32>
    %585 = arith.addf %581, %584 : vector<6x128xf32>
    %586 = arith.subf %390, %398 : vector<6x128xf32>
    %587 = arith.subf %402, %398 : vector<6x128xf32>
    %588 = tpu.reciprocal %587 : vector<6x128xf32> -> vector<6x128xf32>
    %589 = arith.mulf %586, %588 : vector<6x128xf32>
    %590 = arith.mulf %580, %500 : vector<6x128xf32>
    %cst_163 = arith.constant 1.000000e+00 : f32
    %591 = vector.broadcast %cst_163 : f32 to vector<6x128xf32>
    %592 = arith.subf %591, %589 : vector<6x128xf32>
    %593 = arith.mulf %592, %509 : vector<6x128xf32>
    %594 = arith.addf %590, %593 : vector<6x128xf32>
    %595 = arith.subf %390, %400 : vector<6x128xf32>
    %596 = arith.subf %404, %400 : vector<6x128xf32>
    %597 = tpu.reciprocal %596 : vector<6x128xf32> -> vector<6x128xf32>
    %598 = arith.mulf %595, %597 : vector<6x128xf32>
    %599 = arith.mulf %589, %509 : vector<6x128xf32>
    %cst_164 = arith.constant 1.000000e+00 : f32
    %600 = vector.broadcast %cst_164 : f32 to vector<6x128xf32>
    %601 = arith.subf %600, %598 : vector<6x128xf32>
    %602 = arith.mulf %601, %518 : vector<6x128xf32>
    %603 = arith.addf %599, %602 : vector<6x128xf32>
    %604 = arith.subf %390, %402 : vector<6x128xf32>
    %605 = arith.subf %406, %402 : vector<6x128xf32>
    %606 = tpu.reciprocal %605 : vector<6x128xf32> -> vector<6x128xf32>
    %607 = arith.mulf %604, %606 : vector<6x128xf32>
    %608 = arith.mulf %598, %518 : vector<6x128xf32>
    %cst_165 = arith.constant 1.000000e+00 : f32
    %609 = vector.broadcast %cst_165 : f32 to vector<6x128xf32>
    %610 = arith.subf %609, %607 : vector<6x128xf32>
    %611 = arith.mulf %610, %527 : vector<6x128xf32>
    %612 = arith.addf %608, %611 : vector<6x128xf32>
    %613 = arith.subf %390, %404 : vector<6x128xf32>
    %614 = arith.subf %408, %404 : vector<6x128xf32>
    %615 = tpu.reciprocal %614 : vector<6x128xf32> -> vector<6x128xf32>
    %616 = arith.mulf %613, %615 : vector<6x128xf32>
    %617 = arith.mulf %607, %527 : vector<6x128xf32>
    %cst_166 = arith.constant 1.000000e+00 : f32
    %618 = vector.broadcast %cst_166 : f32 to vector<6x128xf32>
    %619 = arith.subf %618, %616 : vector<6x128xf32>
    %620 = arith.mulf %619, %536 : vector<6x128xf32>
    %621 = arith.addf %617, %620 : vector<6x128xf32>
    %622 = arith.subf %390, %406 : vector<6x128xf32>
    %623 = arith.subf %410, %406 : vector<6x128xf32>
    %624 = tpu.reciprocal %623 : vector<6x128xf32> -> vector<6x128xf32>
    %625 = arith.mulf %622, %624 : vector<6x128xf32>
    %626 = arith.mulf %616, %536 : vector<6x128xf32>
    %cst_167 = arith.constant 1.000000e+00 : f32
    %627 = vector.broadcast %cst_167 : f32 to vector<6x128xf32>
    %628 = arith.subf %627, %625 : vector<6x128xf32>
    %629 = arith.mulf %628, %545 : vector<6x128xf32>
    %630 = arith.addf %626, %629 : vector<6x128xf32>
    %631 = arith.subf %390, %408 : vector<6x128xf32>
    %632 = arith.subf %412, %408 : vector<6x128xf32>
    %633 = tpu.reciprocal %632 : vector<6x128xf32> -> vector<6x128xf32>
    %634 = arith.mulf %631, %633 : vector<6x128xf32>
    %635 = arith.mulf %625, %545 : vector<6x128xf32>
    %cst_168 = arith.constant 1.000000e+00 : f32
    %636 = vector.broadcast %cst_168 : f32 to vector<6x128xf32>
    %637 = arith.subf %636, %634 : vector<6x128xf32>
    %638 = arith.mulf %637, %554 : vector<6x128xf32>
    %639 = arith.addf %635, %638 : vector<6x128xf32>
    %640 = arith.subf %390, %410 : vector<6x128xf32>
    %641 = arith.subf %414, %410 : vector<6x128xf32>
    %642 = tpu.reciprocal %641 : vector<6x128xf32> -> vector<6x128xf32>
    %643 = arith.mulf %640, %642 : vector<6x128xf32>
    %644 = arith.mulf %634, %554 : vector<6x128xf32>
    %cst_169 = arith.constant 1.000000e+00 : f32
    %645 = vector.broadcast %cst_169 : f32 to vector<6x128xf32>
    %646 = arith.subf %645, %643 : vector<6x128xf32>
    %647 = arith.mulf %646, %563 : vector<6x128xf32>
    %648 = arith.addf %644, %647 : vector<6x128xf32>
    %649 = arith.subf %390, %392 : vector<6x128xf32>
    %650 = arith.subf %398, %392 : vector<6x128xf32>
    %651 = tpu.reciprocal %650 : vector<6x128xf32> -> vector<6x128xf32>
    %652 = arith.mulf %649, %651 : vector<6x128xf32>
    %653 = arith.subf %390, %394 : vector<6x128xf32>
    %654 = arith.subf %400, %394 : vector<6x128xf32>
    %655 = tpu.reciprocal %654 : vector<6x128xf32> -> vector<6x128xf32>
    %656 = arith.mulf %653, %655 : vector<6x128xf32>
    %657 = arith.mulf %652, %576 : vector<6x128xf32>
    %cst_170 = arith.constant 1.000000e+00 : f32
    %658 = vector.broadcast %cst_170 : f32 to vector<6x128xf32>
    %659 = arith.subf %658, %656 : vector<6x128xf32>
    %660 = arith.mulf %659, %585 : vector<6x128xf32>
    %661 = arith.addf %657, %660 : vector<6x128xf32>
    %662 = arith.subf %390, %396 : vector<6x128xf32>
    %663 = arith.subf %402, %396 : vector<6x128xf32>
    %664 = tpu.reciprocal %663 : vector<6x128xf32> -> vector<6x128xf32>
    %665 = arith.mulf %662, %664 : vector<6x128xf32>
    %666 = arith.mulf %656, %585 : vector<6x128xf32>
    %cst_171 = arith.constant 1.000000e+00 : f32
    %667 = vector.broadcast %cst_171 : f32 to vector<6x128xf32>
    %668 = arith.subf %667, %665 : vector<6x128xf32>
    %669 = arith.mulf %668, %594 : vector<6x128xf32>
    %670 = arith.addf %666, %669 : vector<6x128xf32>
    %671 = arith.subf %390, %398 : vector<6x128xf32>
    %672 = arith.subf %404, %398 : vector<6x128xf32>
    %673 = tpu.reciprocal %672 : vector<6x128xf32> -> vector<6x128xf32>
    %674 = arith.mulf %671, %673 : vector<6x128xf32>
    %675 = arith.mulf %665, %594 : vector<6x128xf32>
    %cst_172 = arith.constant 1.000000e+00 : f32
    %676 = vector.broadcast %cst_172 : f32 to vector<6x128xf32>
    %677 = arith.subf %676, %674 : vector<6x128xf32>
    %678 = arith.mulf %677, %603 : vector<6x128xf32>
    %679 = arith.addf %675, %678 : vector<6x128xf32>
    %680 = arith.subf %390, %400 : vector<6x128xf32>
    %681 = arith.subf %406, %400 : vector<6x128xf32>
    %682 = tpu.reciprocal %681 : vector<6x128xf32> -> vector<6x128xf32>
    %683 = arith.mulf %680, %682 : vector<6x128xf32>
    %684 = arith.mulf %674, %603 : vector<6x128xf32>
    %cst_173 = arith.constant 1.000000e+00 : f32
    %685 = vector.broadcast %cst_173 : f32 to vector<6x128xf32>
    %686 = arith.subf %685, %683 : vector<6x128xf32>
    %687 = arith.mulf %686, %612 : vector<6x128xf32>
    %688 = arith.addf %684, %687 : vector<6x128xf32>
    %689 = arith.subf %390, %402 : vector<6x128xf32>
    %690 = arith.subf %408, %402 : vector<6x128xf32>
    %691 = tpu.reciprocal %690 : vector<6x128xf32> -> vector<6x128xf32>
    %692 = arith.mulf %689, %691 : vector<6x128xf32>
    %693 = arith.mulf %683, %612 : vector<6x128xf32>
    %cst_174 = arith.constant 1.000000e+00 : f32
    %694 = vector.broadcast %cst_174 : f32 to vector<6x128xf32>
    %695 = arith.subf %694, %692 : vector<6x128xf32>
    %696 = arith.mulf %695, %621 : vector<6x128xf32>
    %697 = arith.addf %693, %696 : vector<6x128xf32>
    %698 = arith.subf %390, %404 : vector<6x128xf32>
    %699 = arith.subf %410, %404 : vector<6x128xf32>
    %700 = tpu.reciprocal %699 : vector<6x128xf32> -> vector<6x128xf32>
    %701 = arith.mulf %698, %700 : vector<6x128xf32>
    %702 = arith.mulf %692, %621 : vector<6x128xf32>
    %cst_175 = arith.constant 1.000000e+00 : f32
    %703 = vector.broadcast %cst_175 : f32 to vector<6x128xf32>
    %704 = arith.subf %703, %701 : vector<6x128xf32>
    %705 = arith.mulf %704, %630 : vector<6x128xf32>
    %706 = arith.addf %702, %705 : vector<6x128xf32>
    %707 = arith.subf %390, %406 : vector<6x128xf32>
    %708 = arith.subf %412, %406 : vector<6x128xf32>
    %709 = tpu.reciprocal %708 : vector<6x128xf32> -> vector<6x128xf32>
    %710 = arith.mulf %707, %709 : vector<6x128xf32>
    %711 = arith.mulf %701, %630 : vector<6x128xf32>
    %cst_176 = arith.constant 1.000000e+00 : f32
    %712 = vector.broadcast %cst_176 : f32 to vector<6x128xf32>
    %713 = arith.subf %712, %710 : vector<6x128xf32>
    %714 = arith.mulf %713, %639 : vector<6x128xf32>
    %715 = arith.addf %711, %714 : vector<6x128xf32>
    %716 = arith.subf %390, %408 : vector<6x128xf32>
    %717 = arith.subf %414, %408 : vector<6x128xf32>
    %718 = tpu.reciprocal %717 : vector<6x128xf32> -> vector<6x128xf32>
    %719 = arith.mulf %716, %718 : vector<6x128xf32>
    %720 = arith.mulf %710, %639 : vector<6x128xf32>
    %cst_177 = arith.constant 1.000000e+00 : f32
    %721 = vector.broadcast %cst_177 : f32 to vector<6x128xf32>
    %722 = arith.subf %721, %719 : vector<6x128xf32>
    %723 = arith.mulf %722, %648 : vector<6x128xf32>
    %724 = arith.addf %720, %723 : vector<6x128xf32>
    %c0_178 = arith.constant 0 : index
    %c12_179 = arith.constant 12 : index
    %c0_180 = arith.constant 0 : index
    %c128_181 = arith.constant 128 : index
    %725 = vector.load %arg2[%c0_178, %c12_179, %c0_180, %c128_181] : memref<1x23x6x256xf32, #tpu.memory_space<vmem>>, vector<1x1x6x128xf32>
    %726 = vector.shape_cast %725 : vector<1x1x6x128xf32> to vector<6x128xf32>
    %727 = arith.mulf %726, %661 : vector<6x128xf32>
    %c0_182 = arith.constant 0 : index
    %c13_183 = arith.constant 13 : index
    %c0_184 = arith.constant 0 : index
    %c128_185 = arith.constant 128 : index
    %728 = vector.load %arg2[%c0_182, %c13_183, %c0_184, %c128_185] : memref<1x23x6x256xf32, #tpu.memory_space<vmem>>, vector<1x1x6x128xf32>
    %729 = vector.shape_cast %728 : vector<1x1x6x128xf32> to vector<6x128xf32>
    %730 = arith.mulf %729, %670 : vector<6x128xf32>
    %731 = arith.addf %727, %730 : vector<6x128xf32>
    %c0_186 = arith.constant 0 : index
    %c14_187 = arith.constant 14 : index
    %c0_188 = arith.constant 0 : index
    %c128_189 = arith.constant 128 : index
    %732 = vector.load %arg2[%c0_186, %c14_187, %c0_188, %c128_189] : memref<1x23x6x256xf32, #tpu.memory_space<vmem>>, vector<1x1x6x128xf32>
    %733 = vector.shape_cast %732 : vector<1x1x6x128xf32> to vector<6x128xf32>
    %734 = arith.mulf %733, %679 : vector<6x128xf32>
    %735 = arith.addf %731, %734 : vector<6x128xf32>
    %c0_190 = arith.constant 0 : index
    %c15_191 = arith.constant 15 : index
    %c0_192 = arith.constant 0 : index
    %c128_193 = arith.constant 128 : index
    %736 = vector.load %arg2[%c0_190, %c15_191, %c0_192, %c128_193] : memref<1x23x6x256xf32, #tpu.memory_space<vmem>>, vector<1x1x6x128xf32>
    %737 = vector.shape_cast %736 : vector<1x1x6x128xf32> to vector<6x128xf32>
    %738 = arith.mulf %737, %688 : vector<6x128xf32>
    %739 = arith.addf %735, %738 : vector<6x128xf32>
    %c0_194 = arith.constant 0 : index
    %c16_195 = arith.constant 16 : index
    %c0_196 = arith.constant 0 : index
    %c128_197 = arith.constant 128 : index
    %740 = vector.load %arg2[%c0_194, %c16_195, %c0_196, %c128_197] : memref<1x23x6x256xf32, #tpu.memory_space<vmem>>, vector<1x1x6x128xf32>
    %741 = vector.shape_cast %740 : vector<1x1x6x128xf32> to vector<6x128xf32>
    %742 = arith.mulf %741, %697 : vector<6x128xf32>
    %743 = arith.addf %739, %742 : vector<6x128xf32>
    %c0_198 = arith.constant 0 : index
    %c17_199 = arith.constant 17 : index
    %c0_200 = arith.constant 0 : index
    %c128_201 = arith.constant 128 : index
    %744 = vector.load %arg2[%c0_198, %c17_199, %c0_200, %c128_201] : memref<1x23x6x256xf32, #tpu.memory_space<vmem>>, vector<1x1x6x128xf32>
    %745 = vector.shape_cast %744 : vector<1x1x6x128xf32> to vector<6x128xf32>
    %746 = arith.mulf %745, %706 : vector<6x128xf32>
    %747 = arith.addf %743, %746 : vector<6x128xf32>
    %c0_202 = arith.constant 0 : index
    %c18_203 = arith.constant 18 : index
    %c0_204 = arith.constant 0 : index
    %c128_205 = arith.constant 128 : index
    %748 = vector.load %arg2[%c0_202, %c18_203, %c0_204, %c128_205] : memref<1x23x6x256xf32, #tpu.memory_space<vmem>>, vector<1x1x6x128xf32>
    %749 = vector.shape_cast %748 : vector<1x1x6x128xf32> to vector<6x128xf32>
    %750 = arith.mulf %749, %715 : vector<6x128xf32>
    %751 = arith.addf %747, %750 : vector<6x128xf32>
    %c0_206 = arith.constant 0 : index
    %c19_207 = arith.constant 19 : index
    %c0_208 = arith.constant 0 : index
    %c128_209 = arith.constant 128 : index
    %752 = vector.load %arg2[%c0_206, %c19_207, %c0_208, %c128_209] : memref<1x23x6x256xf32, #tpu.memory_space<vmem>>, vector<1x1x6x128xf32>
    %753 = vector.shape_cast %752 : vector<1x1x6x128xf32> to vector<6x128xf32>
    %754 = arith.mulf %753, %724 : vector<6x128xf32>
    %755 = arith.addf %751, %754 : vector<6x128xf32>
    %756 = arith.negf %390 : vector<6x128xf32>
    %757 = math.exp %756 : vector<6x128xf32>
    %cst_210 = arith.constant 1.000000e+00 : f32
    %758 = vector.broadcast %cst_210 : f32 to vector<6x128xf32>
    %759 = arith.addf %758, %757 : vector<6x128xf32>
    %760 = arith.divf %758, %759 : vector<6x128xf32>
    %761 = arith.mulf %390, %760 : vector<6x128xf32>
    %c0_211 = arith.constant 0 : index
    %c22_212 = arith.constant 22 : index
    %c0_213 = arith.constant 0 : index
    %c128_214 = arith.constant 128 : index
    %762 = vector.load %arg2[%c0_211, %c22_212, %c0_213, %c128_214] : memref<1x23x6x256xf32, #tpu.memory_space<vmem>>, vector<1x1x6x128xf32>
    %763 = vector.shape_cast %762 : vector<1x1x6x128xf32> to vector<6x128xf32>
    %c0_215 = arith.constant 0 : index
    %c20_216 = arith.constant 20 : index
    %c0_217 = arith.constant 0 : index
    %c128_218 = arith.constant 128 : index
    %764 = vector.load %arg2[%c0_215, %c20_216, %c0_217, %c128_218] : memref<1x23x6x256xf32, #tpu.memory_space<vmem>>, vector<1x1x6x128xf32>
    %765 = vector.shape_cast %764 : vector<1x1x6x128xf32> to vector<6x128xf32>
    %766 = arith.mulf %765, %761 : vector<6x128xf32>
    %c0_219 = arith.constant 0 : index
    %c21_220 = arith.constant 21 : index
    %c0_221 = arith.constant 0 : index
    %c128_222 = arith.constant 128 : index
    %767 = vector.load %arg2[%c0_219, %c21_220, %c0_221, %c128_222] : memref<1x23x6x256xf32, #tpu.memory_space<vmem>>, vector<1x1x6x128xf32>
    %768 = vector.shape_cast %767 : vector<1x1x6x128xf32> to vector<6x128xf32>
    %769 = arith.mulf %768, %755 : vector<6x128xf32>
    %770 = arith.addf %766, %769 : vector<6x128xf32>
    %771 = arith.mulf %763, %770 : vector<6x128xf32>
    %772 = vector.extract_strided_slice %771 {offsets = [0, 0], sizes = [2, 128], strides = [1, 1]} : vector<6x128xf32> to vector<2x128xf32>
    %773 = vector.extract_strided_slice %771 {offsets = [2, 0], sizes = [2, 128], strides = [1, 1]} : vector<6x128xf32> to vector<2x128xf32>
    %774 = arith.addf %772, %773 : vector<2x128xf32>
    %775 = vector.extract_strided_slice %771 {offsets = [4, 0], sizes = [2, 128], strides = [1, 1]} : vector<6x128xf32> to vector<2x128xf32>
    %776 = arith.addf %774, %775 : vector<2x128xf32>
    %c0_223 = arith.constant 0 : index
    %c128_224 = arith.constant 128 : index
    %777 = vector.load %arg3[%c0_223, %c128_224] : memref<2x256xf32, #tpu.memory_space<vmem>>, vector<2x128xf32>
    tpu.vector_store %arg3[%c0_223, %c128_224], %776 {strides = array<i32>} : memref<2x256xf32, #tpu.memory_space<vmem>>, vector<2x128xf32>,
    return
  }
  func.func @transform_0(%arg0: i32) -> (i32, i32, i32) {
    %c0_i32 = arith.constant 0 : i32
    %c0_i32_0 = arith.constant 0 : i32
    %c0_i32_1 = arith.constant 0 : i32
    return %arg0, %c0_i32, %c0_i32_0 : i32, i32, i32
  }
  func.func @transform_1(%arg0: i32) -> (i32, i32, i32, i32) {
    %c0_i32 = arith.constant 0 : i32
    %c0_i32_0 = arith.constant 0 : i32
    %c0_i32_1 = arith.constant 0 : i32
    %c0_i32_2 = arith.constant 0 : i32
    return %arg0, %c0_i32, %c0_i32_0, %c0_i32_1 : i32, i32, i32, i32
  }
  func.func @transform_2(%arg0: i32) -> (i32, i32) {
    %c0_i32 = arith.constant 0 : i32
    %c0_i32_0 = arith.constant 0 : i32
    return %c0_i32, %arg0 : i32, i32
  }
}

</mosaic_0001>

<llo_original>
// kernel: kan_layer_forward.1
$region0: #{kan_layer_forward.1}
  #allocation0 [shape = 'u32[]', space=smem, size = 0x4, offset = 0x4, fixed_abs, tag = 'smem constant byte address 0x4 - core index']
  #allocation1 [shape = 'u32[72,128]{1,0:T(1,128)}', space=vmem, size = 0x9000, scoped, tag = 'internal scratch']
  %s0 = inlined_call_operand.vmem [shape: f32[1,6,256], index: 0, kind: input, shape index: {}]
  %s1 = inlined_call_operand.vmem [shape: f32[1,23,6,256], index: 1, kind: input, shape index: {}]
  %s2 = inlined_call_operand.hbm [shape: f32[2,256], index: 2, kind: output, shape index: {}]
  %s3 = sld [smem:[#allocation0]]
  $region18: #{kan_layer_forward.1} parent=0
    _
  %s5 = ssub.s32 1, %s3
  %s6 = scalar_select 0, %s5, %s3
  $region1: #{kan_layer_forward.1} parent=0
    #allocation2 [shape = 'u8[2048]{0}', space=vmem, size = 0x800, scoped, tag = 'output window, operand 0, single buffered']
    #allocation3 [shape = 's32[1]{0}', space=sflag, size = 0x4, scoped, tag = 'scoped memory for kan_layer_forward.1']
    %7 = vsyncpa [#allocation3], 0
    // Predicated region
    $region2: #{kan_layer_forward.1} parent=1 // pred_check
      _
    $region3: #{kan_layer_forward.1} parent=1 // pred_check_branch
      %9 = sbr.rel (0) target = $region5
    $region4: #{kan_layer_forward.1} parent=1 // pred_region
      _
    $region5: #{kan_layer_forward.1} parent=1 // pred_fallthru
      _
    // Predicated region
    $region6: #{kan_layer_forward.1} parent=1 // pred_check
      _
    $region7: #{kan_layer_forward.1} parent=1 // pred_check_branch
      %11 = sbr.rel (0) target = $region9
    $region8: #{kan_layer_forward.1} parent=1 // pred_region
      _
    $region9: #{kan_layer_forward.1} parent=1 // pred_fallthru
      _
    %v12 = vld [vmem:[%s0] sm:$0x3f]
    %v13 = vld [vmem:[%s1] sm:$0x3f]
    %s14 = scalar_lea.vmem %s1, 16
    %v15 = vld [vmem:[%s14] sm:$0x3f]
    %s16 = scalar_lea.vmem %s1, 32
    %v17 = vld [vmem:[%s16] sm:$0x3f]
    %s18 = scalar_lea.vmem %s1, 48
    %v19 = vld [vmem:[%s18] sm:$0x3f]
    %s20 = scalar_lea.vmem %s1, 64
    %v21 = vld [vmem:[%s20] sm:$0x3f]
    %s22 = scalar_lea.vmem %s1, 80
    %v23 = vld [vmem:[%s22] sm:$0x3f]
    %s24 = scalar_lea.vmem %s1, 96
    %v25 = vld [vmem:[%s24] sm:$0x3f]
    %s26 = scalar_lea.vmem %s1, 112
    %v27 = vld [vmem:[%s26] sm:$0x3f]
    %s28 = scalar_lea.vmem %s1, 128
    %v29 = vld [vmem:[%s28] sm:$0x3f]
    %s30 = scalar_lea.vmem %s1, 144
    %v31 = vld [vmem:[%s30] sm:$0x3f]
    %s32 = scalar_lea.vmem %s1, 160
    %v33 = vld [vmem:[%s32] sm:$0x3f]
    %s34 = scalar_lea.vmem %s1, 176
    %v35 = vld [vmem:[%s34] sm:$0x3f]
    %vm36 = vcmp.ge.f32.partialorder %v12, %v13
    %vm37 = vcmp.lt.f32.partialorder %v12, %v15
    %vm38 = vmand %vm36, %vm37
    %v39 = vsel %vm38, 1, 0
    %v40 = vcvt.s32.f32 %v39
    %vm41 = vcmp.ge.f32.partialorder %v12, %v15
    %vm42 = vcmp.lt.f32.partialorder %v12, %v17
    %vm43 = vmand %vm41, %vm42
    %v44 = vsel %vm43, 1, 0
    %v45 = vcvt.s32.f32 %v44
    %vm46 = vcmp.ge.f32.partialorder %v12, %v17
    %vm47 = vcmp.lt.f32.partialorder %v12, %v19
    %vm48 = vmand %vm46, %vm47
    %v49 = vsel %vm48, 1, 0
    %v50 = vcvt.s32.f32 %v49
    %vm51 = vcmp.ge.f32.partialorder %v12, %v19
    %vm52 = vcmp.lt.f32.partialorder %v12, %v21
    %vm53 = vmand %vm51, %vm52
    %v54 = vsel %vm53, 1, 0
    %v55 = vcvt.s32.f32 %v54
    %vm56 = vcmp.ge.f32.partialorder %v12, %v21
    %vm57 = vcmp.lt.f32.partialorder %v12, %v23
    %vm58 = vmand %vm56, %vm57
    %v59 = vsel %vm58, 1, 0
    %v60 = vcvt.s32.f32 %v59
    %vm61 = vcmp.ge.f32.partialorder %v12, %v23
    %vm62 = vcmp.lt.f32.partialorder %v12, %v25
    %vm63 = vmand %vm61, %vm62
    %v64 = vsel %vm63, 1, 0
    %v65 = vcvt.s32.f32 %v64
    %vm66 = vcmp.ge.f32.partialorder %v12, %v25
    %vm67 = vcmp.lt.f32.partialorder %v12, %v27
    %vm68 = vmand %vm66, %vm67
    %v69 = vsel %vm68, 1, 0
    %v70 = vcvt.s32.f32 %v69
    %vm71 = vcmp.ge.f32.partialorder %v12, %v27
    %vm72 = vcmp.lt.f32.partialorder %v12, %v29
    %vm73 = vmand %vm71, %vm72
    %v74 = vsel %vm73, 1, 0
    %v75 = vcvt.s32.f32 %v74
    %vm76 = vcmp.ge.f32.partialorder %v12, %v29
    %vm77 = vcmp.lt.f32.partialorder %v12, %v31
    %vm78 = vmand %vm76, %vm77
    %v79 = vsel %vm78, 1, 0
    %v80 = vcvt.s32.f32 %v79
    %vm81 = vcmp.ge.f32.partialorder %v12, %v31
    %vm82 = vcmp.lt.f32.partialorder %v12, %v33
    %vm83 = vmand %vm81, %vm82
    %v84 = vsel %vm83, 1, 0
    %v85 = vcvt.s32.f32 %v84
    %vm86 = vcmp.ge.f32.partialorder %v12, %v33
    %vm87 = vcmp.lt.f32.partialorder %v12, %v35
    %vm88 = vmand %vm86, %vm87
    %v89 = vsel %vm88, 1, 0
    %v90 = vcvt.s32.f32 %v89
    %v91 = vsub.f32 %v12, %v13
    %v92 = vsub.f32 %v15, %v13
    %v93 = vrcp.pop %v92
    %v94 = vmul.f32 %v92, %v93
    %v95 = vsub.f32 1.0, %v94
    %v96 = vmul.f32 %v93, %v95
    %v97 = vadd.f32 %v93, %v96
    %vm98 = vweird.f32 %v92
    %vm99 = vweird.f32 %v93
    %vm100 = vmor %vm98, %vm99
    %v101 = vsel %vm100, %v93, %v97
    %v102 = vand.u32 2147483647, %v92
    %vm103 = vcmp.eq.f32.partialorder %v102, 8.507059e+37
    %v104 = vand.u32 %v92, 2147483648
    %v105 = vor.u32 1.1754944e-38, %v104
    %v106 = vsel %vm103, %v105, %v101
    %v107 = vmul.f32 %v91, %v106
    %v108 = vsub.f32 %v12, %v15
    %v109 = vsub.f32 %v17, %v15
    %v110 = vrcp.pop %v109
    %v111 = vmul.f32 %v109, %v110
    %v112 = vsub.f32 1.0, %v111
    %v113 = vmul.f32 %v110, %v112
    %v114 = vadd.f32 %v110, %v113
    %vm115 = vweird.f32 %v109
    %vm116 = vweird.f32 %v110
    %vm117 = vmor %vm115, %vm116
    %v118 = vsel %vm117, %v110, %v114
    %v119 = vand.u32 2147483647, %v109
    %vm120 = vcmp.eq.f32.partialorder %v119, 8.507059e+37
    %v121 = vand.u32 %v109, 2147483648
    %v122 = vor.u32 1.1754944e-38, %v121
    %v123 = vsel %vm120, %v122, %v118
    %v124 = vmul.f32 %v108, %v123
    %v125 = vmul.f32 %v107, %v40
    %v126 = vsub.f32 1.0, %v124
    %v127 = vmul.f32 %v126, %v45
    %v128 = vadd.f32 %v125, %v127
    %v129 = vsub.f32 %v12, %v17
    %v130 = vsub.f32 %v19, %v17
    %v131 = vrcp.pop %v130
    %v132 = vmul.f32 %v130, %v131
    %v133 = vsub.f32 1.0, %v132
    %v134 = vmul.f32 %v131, %v133
    %v135 = vadd.f32 %v131, %v134
    %vm136 = vweird.f32 %v130
    %vm137 = vweird.f32 %v131
    %vm138 = vmor %vm136, %vm137
    %v139 = vsel %vm138, %v131, %v135
    %v140 = vand.u32 2147483647, %v130
    %vm141 = vcmp.eq.f32.partialorder %v140, 8.507059e+37
    %v142 = vand.u32 %v130, 2147483648
    %v143 = vor.u32 1.1754944e-38, %v142
    %v144 = vsel %vm141, %v143, %v139
    %v145 = vmul.f32 %v129, %v144
    %v146 = vmul.f32 %v124, %v45
    %v147 = vsub.f32 1.0, %v145
    %v148 = vmul.f32 %v147, %v50
    %v149 = vadd.f32 %v146, %v148
    %v150 = vsub.f32 %v12, %v19
    %v151 = vsub.f32 %v21, %v19
    %v152 = vrcp.pop %v151
    %v153 = vmul.f32 %v151, %v152
    %v154 = vsub.f32 1.0, %v153
    %v155 = vmul.f32 %v152, %v154
    %v156 = vadd.f32 %v152, %v155
    %vm157 = vweird.f32 %v151
    %vm158 = vweird.f32 %v152
    %vm159 = vmor %vm157, %vm158
    %v160 = vsel %vm159, %v152, %v156
    %v161 = vand.u32 2147483647, %v151
    %vm162 = vcmp.eq.f32.partialorder %v161, 8.507059e+37
    %v163 = vand.u32 %v151, 2147483648
    %v164 = vor.u32 1.1754944e-38, %v163
    %v165 = vsel %vm162, %v164, %v160
    %v166 = vmul.f32 %v150, %v165
    %v167 = vmul.f32 %v145, %v50
    %v168 = vsub.f32 1.0, %v166
    %v169 = vmul.f32 %v168, %v55
    %v170 = vadd.f32 %v167, %v169
    %v171 = vsub.f32 %v12, %v21
    %v172 = vsub.f32 %v23, %v21
    %v173 = vrcp.pop %v172
    %v174 = vmul.f32 %v172, %v173
    %v175 = vsub.f32 1.0, %v174
    %v176 = vmul.f32 %v173, %v175
    %v177 = vadd.f32 %v173, %v176
    %vm178 = vweird.f32 %v172
    %vm179 = vweird.f32 %v173
    %vm180 = vmor %vm178, %vm179
    %v181 = vsel %vm180, %v173, %v177
    %v182 = vand.u32 2147483647, %v172
    %vm183 = vcmp.eq.f32.partialorder %v182, 8.507059e+37
    %v184 = vand.u32 %v172, 2147483648
    %v185 = vor.u32 1.1754944e-38, %v184
    %v186 = vsel %vm183, %v185, %v181
    %v187 = vmul.f32 %v171, %v186
    %v188 = vmul.f32 %v166, %v55
    %v189 = vsub.f32 1.0, %v187
    %v190 = vmul.f32 %v189, %v60
    %v191 = vadd.f32 %v188, %v190
    %v192 = vsub.f32 %v12, %v23
    %v193 = vsub.f32 %v25, %v23
    %v194 = vrcp.pop %v193
    %v195 = vmul.f32 %v193, %v194
    %v196 = vsub.f32 1.0, %v195
    %v197 = vmul.f32 %v194, %v196
    %v198 = vadd.f32 %v194, %v197
    %vm199 = vweird.f32 %v193
    %vm200 = vweird.f32 %v194
    %vm201 = vmor %vm199, %vm200
    %v202 = vsel %vm201, %v194, %v198
    %v203 = vand.u32 2147483647, %v193
    %vm204 = vcmp.eq.f32.partialorder %v203, 8.507059e+37
    %v205 = vand.u32 %v193, 2147483648
    %v206 = vor.u32 1.1754944e-38, %v205
    %v207 = vsel %vm204, %v206, %v202
    %v208 = vmul.f32 %v192, %v207
    %v209 = vmul.f32 %v187, %v60
    %v210 = vsub.f32 1.0, %v208
    %v211 = vmul.f32 %v210, %v65
    %v212 = vadd.f32 %v209, %v211
    %v213 = vsub.f32 %v12, %v25
    %v214 = vsub.f32 %v27, %v25
    %v215 = vrcp.pop %v214
    %v216 = vmul.f32 %v214, %v215
    %v217 = vsub.f32 1.0, %v216
    %v218 = vmul.f32 %v215, %v217
    %v219 = vadd.f32 %v215, %v218
    %vm220 = vweird.f32 %v214
    %vm221 = vweird.f32 %v215
    %vm222 = vmor %vm220, %vm221
    %v223 = vsel %vm222, %v215, %v219
    %v224 = vand.u32 2147483647, %v214
    %vm225 = vcmp.eq.f32.partialorder %v224, 8.507059e+37
    %v226 = vand.u32 %v214, 2147483648
    %v227 = vor.u32 1.1754944e-38, %v226
    %v228 = vsel %vm225, %v227, %v223
    %v229 = vmul.f32 %v213, %v228
    %v230 = vmul.f32 %v208, %v65
    %v231 = vsub.f32 1.0, %v229
    %v232 = vmul.f32 %v231, %v70
    %v233 = vadd.f32 %v230, %v232
    %v234 = vsub.f32 %v12, %v27
    %v235 = vsub.f32 %v29, %v27
    %v236 = vrcp.pop %v235
    %v237 = vmul.f32 %v235, %v236
    %v238 = vsub.f32 1.0, %v237
    %v239 = vmul.f32 %v236, %v238
    %v240 = vadd.f32 %v236, %v239
    %vm241 = vweird.f32 %v235
    %vm242 = vweird.f32 %v236
    %vm243 = vmor %vm241, %vm242
    %v244 = vsel %vm243, %v236, %v240
    %v245 = vand.u32 2147483647, %v235
    %vm246 = vcmp.eq.f32.partialorder %v245, 8.507059e+37
    %v247 = vand.u32 %v235, 2147483648
    %v248 = vor.u32 1.1754944e-38, %v247
    %v249 = vsel %vm246, %v248, %v244
    %v250 = vmul.f32 %v234, %v249
    %v251 = vmul.f32 %v229, %v70
    %v252 = vsub.f32 1.0, %v250
    %v253 = vmul.f32 %v252, %v75
    %v254 = vadd.f32 %v251, %v253
    %v255 = vsub.f32 %v12, %v29
    %v256 = vsub.f32 %v31, %v29
    %v257 = vrcp.pop %v256
    %v258 = vmul.f32 %v256, %v257
    %v259 = vsub.f32 1.0, %v258
    %v260 = vmul.f32 %v257, %v259
    %v261 = vadd.f32 %v257, %v260
    %vm262 = vweird.f32 %v256
    %vm263 = vweird.f32 %v257
    %vm264 = vmor %vm262, %vm263
    %v265 = vsel %vm264, %v257, %v261
    %v266 = vand.u32 2147483647, %v256
    %vm267 = vcmp.eq.f32.partialorder %v266, 8.507059e+37
    %v268 = vand.u32 %v256, 2147483648
    %v269 = vor.u32 1.1754944e-38, %v268
    %v270 = vsel %vm267, %v269, %v265
    %v271 = vmul.f32 %v255, %v270
    %v272 = vmul.f32 %v250, %v75
    %v273 = vsub.f32 1.0, %v271
    %v274 = vmul.f32 %v273, %v80
    %v275 = vadd.f32 %v272, %v274
    %v276 = vsub.f32 %v12, %v31
    %v277 = vsub.f32 %v33, %v31
    %v278 = vrcp.pop %v277
    %v279 = vmul.f32 %v277, %v278
    %v280 = vsub.f32 1.0, %v279
    %v281 = vmul.f32 %v278, %v280
    %v282 = vadd.f32 %v278, %v281
    %vm283 = vweird.f32 %v277
    %vm284 = vweird.f32 %v278
    %vm285 = vmor %vm283, %vm284
    %v286 = vsel %vm285, %v278, %v282
    %v287 = vand.u32 2147483647, %v277
    %vm288 = vcmp.eq.f32.partialorder %v287, 8.507059e+37
    %v289 = vand.u32 %v277, 2147483648
    %v290 = vor.u32 1.1754944e-38, %v289
    %v291 = vsel %vm288, %v290, %v286
    %v292 = vmul.f32 %v276, %v291
    %v293 = vmul.f32 %v271, %v80
    %v294 = vsub.f32 1.0, %v292
    %v295 = vmul.f32 %v294, %v85
    %v296 = vadd.f32 %v293, %v295
    %v297 = vsub.f32 %v12, %v33
    %v298 = vsub.f32 %v35, %v33
    %v299 = vrcp.pop %v298
    %v300 = vmul.f32 %v298, %v299
    %v301 = vsub.f32 1.0, %v300
    %v302 = vmul.f32 %v299, %v301
    %v303 = vadd.f32 %v299, %v302
    %vm304 = vweird.f32 %v298
    %vm305 = vweird.f32 %v299
    %vm306 = vmor %vm304, %vm305
    %v307 = vsel %vm306, %v299, %v303
    %v308 = vand.u32 2147483647, %v298
    %vm309 = vcmp.eq.f32.partialorder %v308, 8.507059e+37
    %v310 = vand.u32 %v298, 2147483648
    %v311 = vor.u32 1.1754944e-38, %v310
    %v312 = vsel %vm309, %v311, %v307
    %v313 = vmul.f32 %v297, %v312
    %v314 = vmul.f32 %v292, %v85
    %v315 = vsub.f32 1.0, %v313
    %v316 = vmul.f32 %v315, %v90
    %v317 = vadd.f32 %v314, %v316
    %v318 = vsub.f32 %v17, %v13
    %v319 = vrcp.pop %v318
    %v320 = vmul.f32 %v318, %v319
    %v321 = vsub.f32 1.0, %v320
    %v322 = vmul.f32 %v319, %v321
    %v323 = vadd.f32 %v319, %v322
    %vm324 = vweird.f32 %v318
    %vm325 = vweird.f32 %v319
    %vm326 = vmor %vm324, %vm325
    %v327 = vsel %vm326, %v319, %v323
    %v328 = vand.u32 2147483647, %v318
    %vm329 = vcmp.eq.f32.partialorder %v328, 8.507059e+37
    %v330 = vand.u32 %v318, 2147483648
    %v331 = vor.u32 1.1754944e-38, %v330
    %v332 = vsel %vm329, %v331, %v327
    %v333 = vmul.f32 %v91, %v332
    %v334 = vsub.f32 %v19, %v15
    %v335 = vrcp.pop %v334
    %v336 = vmul.f32 %v334, %v335
    %v337 = vsub.f32 1.0, %v336
    %v338 = vmul.f32 %v335, %v337
    %v339 = vadd.f32 %v335, %v338
    %vm340 = vweird.f32 %v334
    %vm341 = vweird.f32 %v335
    %vm342 = vmor %vm340, %vm341
    %v343 = vsel %vm342, %v335, %v339
    %v344 = vand.u32 2147483647, %v334
    %vm345 = vcmp.eq.f32.partialorder %v344, 8.507059e+37
    %v346 = vand.u32 %v334, 2147483648
    %v347 = vor.u32 1.1754944e-38, %v346
    %v348 = vsel %vm345, %v347, %v343
    %v349 = vmul.f32 %v108, %v348
    %v350 = vmul.f32 %v333, %v128
    %v351 = vsub.f32 1.0, %v349
    %v352 = vmul.f32 %v351, %v149
    %v353 = vadd.f32 %v350, %v352
    %v354 = vsub.f32 %v21, %v17
    %v355 = vrcp.pop %v354
    %v356 = vmul.f32 %v354, %v355
    %v357 = vsub.f32 1.0, %v356
    %v358 = vmul.f32 %v355, %v357
    %v359 = vadd.f32 %v355, %v358
    %vm360 = vweird.f32 %v354
    %vm361 = vweird.f32 %v355
    %vm362 = vmor %vm360, %vm361
    %v363 = vsel %vm362, %v355, %v359
    %v364 = vand.u32 2147483647, %v354
    %vm365 = vcmp.eq.f32.partialorder %v364, 8.507059e+37
    %v366 = vand.u32 %v354, 2147483648
    %v367 = vor.u32 1.1754944e-38, %v366
    %v368 = vsel %vm365, %v367, %v363
    %v369 = vmul.f32 %v129, %v368
    %v370 = vmul.f32 %v349, %v149
    %v371 = vsub.f32 1.0, %v369
    %v372 = vmul.f32 %v371, %v170
    %v373 = vadd.f32 %v370, %v372
    %v374 = vsub.f32 %v23, %v19
    %v375 = vrcp.pop %v374
    %v376 = vmul.f32 %v374, %v375
    %v377 = vsub.f32 1.0, %v376
    %v378 = vmul.f32 %v375, %v377
    %v379 = vadd.f32 %v375, %v378
    %vm380 = vweird.f32 %v374
    %vm381 = vweird.f32 %v375
    %vm382 = vmor %vm380, %vm381
    %v383 = vsel %vm382, %v375, %v379
    %v384 = vand.u32 2147483647, %v374
    %vm385 = vcmp.eq.f32.partialorder %v384, 8.507059e+37
    %v386 = vand.u32 %v374, 2147483648
    %v387 = vor.u32 1.1754944e-38, %v386
    %v388 = vsel %vm385, %v387, %v383
    %v389 = vmul.f32 %v150, %v388
    %v390 = vmul.f32 %v369, %v170
    %v391 = vsub.f32 1.0, %v389
    %v392 = vmul.f32 %v391, %v191
    %v393 = vadd.f32 %v390, %v392
    %v394 = vsub.f32 %v25, %v21
    %v395 = vrcp.pop %v394
    %v396 = vmul.f32 %v394, %v395
    %v397 = vsub.f32 1.0, %v396
    %v398 = vmul.f32 %v395, %v397
    %v399 = vadd.f32 %v395, %v398
    %vm400 = vweird.f32 %v394
    %vm401 = vweird.f32 %v395
    %vm402 = vmor %vm400, %vm401
    %v403 = vsel %vm402, %v395, %v399
    %v404 = vand.u32 2147483647, %v394
    %vm405 = vcmp.eq.f32.partialorder %v404, 8.507059e+37
    %v406 = vand.u32 %v394, 2147483648
    %v407 = vor.u32 1.1754944e-38, %v406
    %v408 = vsel %vm405, %v407, %v403
    %v409 = vmul.f32 %v171, %v408
    %v410 = vmul.f32 %v389, %v191
    %v411 = vsub.f32 1.0, %v409
    %v412 = vmul.f32 %v411, %v212
    %v413 = vadd.f32 %v410, %v412
    %v414 = vsub.f32 %v27, %v23
    %v415 = vrcp.pop %v414
    %v416 = vmul.f32 %v414, %v415
    %v417 = vsub.f32 1.0, %v416
    %v418 = vmul.f32 %v415, %v417
    %v419 = vadd.f32 %v415, %v418
    %vm420 = vweird.f32 %v414
    %vm421 = vweird.f32 %v415
    %vm422 = vmor %vm420, %vm421
    %v423 = vsel %vm422, %v415, %v419
    %v424 = vand.u32 2147483647, %v414
    %vm425 = vcmp.eq.f32.partialorder %v424, 8.507059e+37
    %v426 = vand.u32 %v414, 2147483648
    %v427 = vor.u32 1.1754944e-38, %v426
    %v428 = vsel %vm425, %v427, %v423
    %v429 = vmul.f32 %v192, %v428
    %v430 = vmul.f32 %v409, %v212
    %v431 = vsub.f32 1.0, %v429
    %v432 = vmul.f32 %v431, %v233
    %v433 = vadd.f32 %v430, %v432
    %v434 = vsub.f32 %v29, %v25
    %v435 = vrcp.pop %v434
    %v436 = vmul.f32 %v434, %v435
    %v437 = vsub.f32 1.0, %v436
    %v438 = vmul.f32 %v435, %v437
    %v439 = vadd.f32 %v435, %v438
    %vm440 = vweird.f32 %v434
    %vm441 = vweird.f32 %v435
    %vm442 = vmor %vm440, %vm441
    %v443 = vsel %vm442, %v435, %v439
    %v444 = vand.u32 2147483647, %v434
    %vm445 = vcmp.eq.f32.partialorder %v444, 8.507059e+37
    %v446 = vand.u32 %v434, 2147483648
    %v447 = vor.u32 1.1754944e-38, %v446
    %v448 = vsel %vm445, %v447, %v443
    %v449 = vmul.f32 %v213, %v448
    %v450 = vmul.f32 %v429, %v233
    %v451 = vsub.f32 1.0, %v449
    %v452 = vmul.f32 %v451, %v254
    %v453 = vadd.f32 %v450, %v452
    %v454 = vsub.f32 %v31, %v27
    %v455 = vrcp.pop %v454
    %v456 = vmul.f32 %v454, %v455
    %v457 = vsub.f32 1.0, %v456
    %v458 = vmul.f32 %v455, %v457
    %v459 = vadd.f32 %v455, %v458
    %vm460 = vweird.f32 %v454
    %vm461 = vweird.f32 %v455
    %vm462 = vmor %vm460, %vm461
    %v463 = vsel %vm462, %v455, %v459
    %v464 = vand.u32 2147483647, %v454
    %vm465 = vcmp.eq.f32.partialorder %v464, 8.507059e+37
    %v466 = vand.u32 %v454, 2147483648
    %v467 = vor.u32 1.1754944e-38, %v466
    %v468 = vsel %vm465, %v467, %v463
    %v469 = vmul.f32 %v234, %v468
    %v470 = vmul.f32 %v449, %v254
    %v471 = vsub.f32 1.0, %v469
    %v472 = vmul.f32 %v471, %v275
    %v473 = vadd.f32 %v470, %v472
    %v474 = vsub.f32 %v33, %v29
    %v475 = vrcp.pop %v474
    %v476 = vmul.f32 %v474, %v475
    %v477 = vsub.f32 1.0, %v476
    %v478 = vmul.f32 %v475, %v477
    %v479 = vadd.f32 %v475, %v478
    %vm480 = vweird.f32 %v474
    %vm481 = vweird.f32 %v475
    %vm482 = vmor %vm480, %vm481
    %v483 = vsel %vm482, %v475, %v479
    %v484 = vand.u32 2147483647, %v474
    %vm485 = vcmp.eq.f32.partialorder %v484, 8.507059e+37
    %v486 = vand.u32 %v474, 2147483648
    %v487 = vor.u32 1.1754944e-38, %v486
    %v488 = vsel %vm485, %v487, %v483
    %v489 = vmul.f32 %v255, %v488
    %v490 = vmul.f32 %v469, %v275
    %v491 = vsub.f32 1.0, %v489
    %v492 = vmul.f32 %v491, %v296
    %v493 = vadd.f32 %v490, %v492
    %v494 = vsub.f32 %v35, %v31
    %v495 = vrcp.pop %v494
    %v496 = vmul.f32 %v494, %v495
    %v497 = vsub.f32 1.0, %v496
    %v498 = vmul.f32 %v495, %v497
    %v499 = vadd.f32 %v495, %v498
    %vm500 = vweird.f32 %v494
    %vm501 = vweird.f32 %v495
    %vm502 = vmor %vm500, %vm501
    %v503 = vsel %vm502, %v495, %v499
    %v504 = vand.u32 2147483647, %v494
    %vm505 = vcmp.eq.f32.partialorder %v504, 8.507059e+37
    %v506 = vand.u32 %v494, 2147483648
    %v507 = vor.u32 1.1754944e-38, %v506
    %v508 = vsel %vm505, %v507, %v503
    %v509 = vmul.f32 %v276, %v508
    %v510 = vmul.f32 %v489, %v296
    %v511 = vsub.f32 1.0, %v509
    %v512 = vmul.f32 %v511, %v317
    %v513 = vadd.f32 %v510, %v512
    %v514 = vsub.f32 %v19, %v13
    %v515 = vrcp.pop %v514
    %v516 = vmul.f32 %v514, %v515
    %v517 = vsub.f32 1.0, %v516
    %v518 = vmul.f32 %v515, %v517
    %v519 = vadd.f32 %v515, %v518
    %vm520 = vweird.f32 %v514
    %vm521 = vweird.f32 %v515
    %vm522 = vmor %vm520, %vm521
    %v523 = vsel %vm522, %v515, %v519
    %v524 = vand.u32 2147483647, %v514
    %vm525 = vcmp.eq.f32.partialorder %v524, 8.507059e+37
    %v526 = vand.u32 %v514, 2147483648
    %v527 = vor.u32 1.1754944e-38, %v526
    %v528 = vsel %vm525, %v527, %v523
    %v529 = vmul.f32 %v91, %v528
    %v530 = vsub.f32 %v21, %v15
    %v531 = vrcp.pop %v530
    %v532 = vmul.f32 %v530, %v531
    %v533 = vsub.f32 1.0, %v532
    %v534 = vmul.f32 %v531, %v533
    %v535 = vadd.f32 %v531, %v534
    %vm536 = vweird.f32 %v530
    %vm537 = vweird.f32 %v531
    %vm538 = vmor %vm536, %vm537
    %v539 = vsel %vm538, %v531, %v535
    %v540 = vand.u32 2147483647, %v530
    %vm541 = vcmp.eq.f32.partialorder %v540, 8.507059e+37
    %v542 = vand.u32 %v530, 2147483648
    %v543 = vor.u32 1.1754944e-38, %v542
    %v544 = vsel %vm541, %v543, %v539
    %v545 = vmul.f32 %v108, %v544
    %v546 = vmul.f32 %v529, %v353
    %v547 = vsub.f32 1.0, %v545
    %v548 = vmul.f32 %v547, %v373
    %v549 = vadd.f32 %v546, %v548
    %v550 = vsub.f32 %v23, %v17
    %v551 = vrcp.pop %v550
    %v552 = vmul.f32 %v550, %v551
    %v553 = vsub.f32 1.0, %v552
    %v554 = vmul.f32 %v551, %v553
    %v555 = vadd.f32 %v551, %v554
    %vm556 = vweird.f32 %v550
    %vm557 = vweird.f32 %v551
    %vm558 = vmor %vm556, %vm557
    %v559 = vsel %vm558, %v551, %v555
    %v560 = vand.u32 2147483647, %v550
    %vm561 = vcmp.eq.f32.partialorder %v560, 8.507059e+37
    %v562 = vand.u32 %v550, 2147483648
    %v563 = vor.u32 1.1754944e-38, %v562
    %v564 = vsel %vm561, %v563, %v559
    %v565 = vmul.f32 %v129, %v564
    %v566 = vmul.f32 %v545, %v373
    %v567 = vsub.f32 1.0, %v565
    %v568 = vmul.f32 %v567, %v393
    %v569 = vadd.f32 %v566, %v568
    %v570 = vsub.f32 %v25, %v19
    %v571 = vrcp.pop %v570
    %v572 = vmul.f32 %v570, %v571
    %v573 = vsub.f32 1.0, %v572
    %v574 = vmul.f32 %v571, %v573
    %v575 = vadd.f32 %v571, %v574
    %vm576 = vweird.f32 %v570
    %vm577 = vweird.f32 %v571
    %vm578 = vmor %vm576, %vm577
    %v579 = vsel %vm578, %v571, %v575
    %v580 = vand.u32 2147483647, %v570
    %vm581 = vcmp.eq.f32.partialorder %v580, 8.507059e+37
    %v582 = vand.u32 %v570, 2147483648
    %v583 = vor.u32 1.1754944e-38, %v582
    %v584 = vsel %vm581, %v583, %v579
    %v585 = vmul.f32 %v150, %v584
    %v586 = vmul.f32 %v565, %v393
    %v587 = vsub.f32 1.0, %v585
    %v588 = vmul.f32 %v587, %v413
    %v589 = vadd.f32 %v586, %v588
    %v590 = vsub.f32 %v27, %v21
    %v591 = vrcp.pop %v590
    %v592 = vmul.f32 %v590, %v591
    %v593 = vsub.f32 1.0, %v592
    %v594 = vmul.f32 %v591, %v593
    %v595 = vadd.f32 %v591, %v594
    %vm596 = vweird.f32 %v590
    %vm597 = vweird.f32 %v591
    %vm598 = vmor %vm596, %vm597
    %v599 = vsel %vm598, %v591, %v595
    %v600 = vand.u32 2147483647, %v590
    %vm601 = vcmp.eq.f32.partialorder %v600, 8.507059e+37
    %v602 = vand.u32 %v590, 2147483648
    %v603 = vor.u32 1.1754944e-38, %v602
    %v604 = vsel %vm601, %v603, %v599
    %v605 = vmul.f32 %v171, %v604
    %v606 = vmul.f32 %v585, %v413
    %v607 = vsub.f32 1.0, %v605
    %v608 = vmul.f32 %v607, %v433
    %v609 = vadd.f32 %v606, %v608
    %v610 = vsub.f32 %v29, %v23
    %v611 = vrcp.pop %v610
    %v612 = vmul.f32 %v610, %v611
    %v613 = vsub.f32 1.0, %v612
    %v614 = vmul.f32 %v611, %v613
    %v615 = vadd.f32 %v611, %v614
    %vm616 = vweird.f32 %v610
    %vm617 = vweird.f32 %v611
    %vm618 = vmor %vm616, %vm617
    %v619 = vsel %vm618, %v611, %v615
    %v620 = vand.u32 2147483647, %v610
    %vm621 = vcmp.eq.f32.partialorder %v620, 8.507059e+37
    %v622 = vand.u32 %v610, 2147483648
    %v623 = vor.u32 1.1754944e-38, %v622
    %v624 = vsel %vm621, %v623, %v619
    %v625 = vmul.f32 %v192, %v624
    %v626 = vmul.f32 %v605, %v433
    %v627 = vsub.f32 1.0, %v625
    %v628 = vmul.f32 %v627, %v453
    %v629 = vadd.f32 %v626, %v628
    %v630 = vsub.f32 %v31, %v25
    %v631 = vrcp.pop %v630
    %v632 = vmul.f32 %v630, %v631
    %v633 = vsub.f32 1.0, %v632
    %v634 = vmul.f32 %v631, %v633
    %v635 = vadd.f32 %v631, %v634
    %vm636 = vweird.f32 %v630
    %vm637 = vweird.f32 %v631
    %vm638 = vmor %vm636, %vm637
    %v639 = vsel %vm638, %v631, %v635
    %v640 = vand.u32 2147483647, %v630
    %vm641 = vcmp.eq.f32.partialorder %v640, 8.507059e+37
    %v642 = vand.u32 %v630, 2147483648
    %v643 = vor.u32 1.1754944e-38, %v642
    %v644 = vsel %vm641, %v643, %v639
    %v645 = vmul.f32 %v213, %v644
    %v646 = vmul.f32 %v625, %v453
    %v647 = vsub.f32 1.0, %v645
    %v648 = vmul.f32 %v647, %v473
    %v649 = vadd.f32 %v646, %v648
    %v650 = vsub.f32 %v33, %v27
    %v651 = vrcp.pop %v650
    %v652 = vmul.f32 %v650, %v651
    %v653 = vsub.f32 1.0, %v652
    %v654 = vmul.f32 %v651, %v653
    %v655 = vadd.f32 %v651, %v654
    %vm656 = vweird.f32 %v650
    %vm657 = vweird.f32 %v651
    %vm658 = vmor %vm656, %vm657
    %v659 = vsel %vm658, %v651, %v655
    %v660 = vand.u32 2147483647, %v650
    %vm661 = vcmp.eq.f32.partialorder %v660, 8.507059e+37
    %v662 = vand.u32 %v650, 2147483648
    %v663 = vor.u32 1.1754944e-38, %v662
    %v664 = vsel %vm661, %v663, %v659
    %v665 = vmul.f32 %v234, %v664
    %v666 = vmul.f32 %v645, %v473
    %v667 = vsub.f32 1.0, %v665
    %v668 = vmul.f32 %v667, %v493
    %v669 = vadd.f32 %v666, %v668
    %v670 = vsub.f32 %v35, %v29
    %v671 = vrcp.pop %v670
    %v672 = vmul.f32 %v670, %v671
    %v673 = vsub.f32 1.0, %v672
    %v674 = vmul.f32 %v671, %v673
    %v675 = vadd.f32 %v671, %v674
    %vm676 = vweird.f32 %v670
    %vm677 = vweird.f32 %v671
    %vm678 = vmor %vm676, %vm677
    %v679 = vsel %vm678, %v671, %v675
    %v680 = vand.u32 2147483647, %v670
    %vm681 = vcmp.eq.f32.partialorder %v680, 8.507059e+37
    %v682 = vand.u32 %v670, 2147483648
    %v683 = vor.u32 1.1754944e-38, %v682
    %v684 = vsel %vm681, %v683, %v679
    %v685 = vmul.f32 %v255, %v684
    %v686 = vmul.f32 %v665, %v493
    %v687 = vsub.f32 1.0, %v685
    %v688 = vmul.f32 %v687, %v513
    %v689 = vadd.f32 %v686, %v688
    %s690 = scalar_lea.vmem %s1, 192
    %v691 = vld [vmem:[%s690] sm:$0x3f]
    %v692 = vmul.f32 %v691, %v549
    %s693 = scalar_lea.vmem %s1, 208
    %v694 = vld [vmem:[%s693] sm:$0x3f]
    %v695 = vmul.f32 %v694, %v569
    %v696 = vadd.f32 %v692, %v695
    %s697 = scalar_lea.vmem %s1, 224
    %v698 = vld [vmem:[%s697] sm:$0x3f]
    %v699 = vmul.f32 %v698, %v589
    %v700 = vadd.f32 %v696, %v699
    %s701 = scalar_lea.vmem %s1, 240
    %v702 = vld [vmem:[%s701] sm:$0x3f]
    %v703 = vmul.f32 %v702, %v609
    %v704 = vadd.f32 %v700, %v703
    %s705 = scalar_lea.vmem %s1, 256
    %v706 = vld [vmem:[%s705] sm:$0x3f]
    %v707 = vmul.f32 %v706, %v629
    %v708 = vadd.f32 %v704, %v707
    %s709 = scalar_lea.vmem %s1, 272
    %v710 = vld [vmem:[%s709] sm:$0x3f]
    %v711 = vmul.f32 %v710, %v649
    %v712 = vadd.f32 %v708, %v711
    %s713 = scalar_lea.vmem %s1, 288
    %v714 = vld [vmem:[%s713] sm:$0x3f]
    %v715 = vmul.f32 %v714, %v669
    %v716 = vadd.f32 %v712, %v715
    %s717 = scalar_lea.vmem %s1, 304
    %v718 = vld [vmem:[%s717] sm:$0x3f]
    %v719 = vmul.f32 %v718, %v689
    %v720 = vadd.f32 %v716, %v719
    %v721 = vxor.u32 %v12, 2147483648
    %v722 = vmul.f32 %v721, 1.442695
    %v723 = vpow.pop %v722
    %v724 = vadd.f32 %v723, 1.0
    %v725 = vrcp.pop %v724
    %v726 = vmul.f32 %v724, %v725
    %v727 = vsub.f32 1.0, %v726
    %v728 = vmul.f32 %v725, %v727
    %v729 = vadd.f32 %v725, %v728
    %vm730 = vweird.f32 %v724
    %vm731 = vweird.f32 %v725
    %vm732 = vmor %vm730, %vm731
    %v733 = vsel %vm732, %v725, %v729
    %v734 = vand.u32 2147483647, %v724
    %vm735 = vcmp.eq.f32.partialorder %v734, 8.507059e+37
    %v736 = vand.u32 %v724, 2147483648
    %v737 = vor.u32 1.1754944e-38, %v736
    %v738 = vsel %vm735, %v737, %v733
    %v739 = vmul.f32 1.0, %v738
    %v740 = vmul.f32 %v12, %v739
    %s741 = scalar_lea.vmem %s1, 352
    %v742 = vld [vmem:[%s741] sm:$0x3f]
    %s743 = scalar_lea.vmem %s1, 320
    %v744 = vld [vmem:[%s743] sm:$0x3f]
    %v745 = vmul.f32 %v744, %v740
    %s746 = scalar_lea.vmem %s1, 336
    %v747 = vld [vmem:[%s746] sm:$0x3f]
    %v748 = vmul.f32 %v747, %v720
    %v749 = vadd.f32 %v745, %v748
    %v750 = vmul.f32 %v742, %v749
    %v752 = vrot.slane %v750, 2
    %v754 = vadd.f32 %v750, %v752
    %v755 = vrot.slane %v750, 4
    %v757 = vadd.f32 %v754, %v755
    %758 = vst [vmem:[#allocation2] sm:$0x3] %v757
    %v759 = vld [vmem:[%s0 + $0x8] sm:$0x3f]
    %v760 = vld [vmem:[%s1 + $0x8] sm:$0x3f]
    %v761 = vld [vmem:[%s14 + $0x8] sm:$0x3f]
    %v762 = vld [vmem:[%s16 + $0x8] sm:$0x3f]
    %v763 = vld [vmem:[%s18 + $0x8] sm:$0x3f]
    %v764 = vld [vmem:[%s20 + $0x8] sm:$0x3f]
    %v765 = vld [vmem:[%s22 + $0x8] sm:$0x3f]
    %v766 = vld [vmem:[%s24 + $0x8] sm:$0x3f]
    %v767 = vld [vmem:[%s26 + $0x8] sm:$0x3f]
    %v768 = vld [vmem:[%s28 + $0x8] sm:$0x3f]
    %v769 = vld [vmem:[%s30 + $0x8] sm:$0x3f]
    %v770 = vld [vmem:[%s32 + $0x8] sm:$0x3f]
    %v771 = vld [vmem:[%s34 + $0x8] sm:$0x3f]
    %vm772 = vcmp.ge.f32.partialorder %v759, %v760
    %vm773 = vcmp.lt.f32.partialorder %v759, %v761
    %vm774 = vmand %vm772, %vm773
    %v775 = vsel %vm774, 1, 0
    %v776 = vcvt.s32.f32 %v775
    %vm777 = vcmp.ge.f32.partialorder %v759, %v761
    %vm778 = vcmp.lt.f32.partialorder %v759, %v762
    %vm779 = vmand %vm777, %vm778
    %v780 = vsel %vm779, 1, 0
    %v781 = vcvt.s32.f32 %v780
    %vm782 = vcmp.ge.f32.partialorder %v759, %v762
    %vm783 = vcmp.lt.f32.partialorder %v759, %v763
    %vm784 = vmand %vm782, %vm783
    %v785 = vsel %vm784, 1, 0
    %v786 = vcvt.s32.f32 %v785
    %vm787 = vcmp.ge.f32.partialorder %v759, %v763
    %vm788 = vcmp.lt.f32.partialorder %v759, %v764
    %vm789 = vmand %vm787, %vm788
    %v790 = vsel %vm789, 1, 0
    %v791 = vcvt.s32.f32 %v790
    %vm792 = vcmp.ge.f32.partialorder %v759, %v764
    %vm793 = vcmp.lt.f32.partialorder %v759, %v765
    %vm794 = vmand %vm792, %vm793
    %v795 = vsel %vm794, 1, 0
    %v796 = vcvt.s32.f32 %v795
    %vm797 = vcmp.ge.f32.partialorder %v759, %v765
    %vm798 = vcmp.lt.f32.partialorder %v759, %v766
    %vm799 = vmand %vm797, %vm798
    %v800 = vsel %vm799, 1, 0
    %v801 = vcvt.s32.f32 %v800
    %vm802 = vcmp.ge.f32.partialorder %v759, %v766
    %vm803 = vcmp.lt.f32.partialorder %v759, %v767
    %vm804 = vmand %vm802, %vm803
    %v805 = vsel %vm804, 1, 0
    %v806 = vcvt.s32.f32 %v805
    %vm807 = vcmp.ge.f32.partialorder %v759, %v767
    %vm808 = vcmp.lt.f32.partialorder %v759, %v768
    %vm809 = vmand %vm807, %vm808
    %v810 = vsel %vm809, 1, 0
    %v811 = vcvt.s32.f32 %v810
    %vm812 = vcmp.ge.f32.partialorder %v759, %v768
    %vm813 = vcmp.lt.f32.partialorder %v759, %v769
    %vm814 = vmand %vm812, %vm813
    %v815 = vsel %vm814, 1, 0
    %v816 = vcvt.s32.f32 %v815
    %vm817 = vcmp.ge.f32.partialorder %v759, %v769
    %vm818 = vcmp.lt.f32.partialorder %v759, %v770
    %vm819 = vmand %vm817, %vm818
    %v820 = vsel %vm819, 1, 0
    %v821 = vcvt.s32.f32 %v820
    %vm822 = vcmp.ge.f32.partialorder %v759, %v770
    %vm823 = vcmp.lt.f32.partialorder %v759, %v771
    %vm824 = vmand %vm822, %vm823
    %v825 = vsel %vm824, 1, 0
    %v826 = vcvt.s32.f32 %v825
    %v827 = vsub.f32 %v759, %v760
    %v828 = vsub.f32 %v761, %v760
    %v829 = vrcp.pop %v828
    %v830 = vmul.f32 %v828, %v829
    %v831 = vsub.f32 1.0, %v830
    %v832 = vmul.f32 %v829, %v831
    %v833 = vadd.f32 %v829, %v832
    %vm834 = vweird.f32 %v828
    %vm835 = vweird.f32 %v829
    %vm836 = vmor %vm834, %vm835
    %v837 = vsel %vm836, %v829, %v833
    %v838 = vand.u32 2147483647, %v828
    %vm839 = vcmp.eq.f32.partialorder %v838, 8.507059e+37
    %v840 = vand.u32 %v828, 2147483648
    %v841 = vor.u32 1.1754944e-38, %v840
    %v842 = vsel %vm839, %v841, %v837
    %v843 = vmul.f32 %v827, %v842
    %v844 = vsub.f32 %v759, %v761
    %v845 = vsub.f32 %v762, %v761
    %v846 = vrcp.pop %v845
    %v847 = vmul.f32 %v845, %v846
    %v848 = vsub.f32 1.0, %v847
    %v849 = vmul.f32 %v846, %v848
    %v850 = vadd.f32 %v846, %v849
    %vm851 = vweird.f32 %v845
    %vm852 = vweird.f32 %v846
    %vm853 = vmor %vm851, %vm852
    %v854 = vsel %vm853, %v846, %v850
    %v855 = vand.u32 2147483647, %v845
    %vm856 = vcmp.eq.f32.partialorder %v855, 8.507059e+37
    %v857 = vand.u32 %v845, 2147483648
    %v858 = vor.u32 1.1754944e-38, %v857
    %v859 = vsel %vm856, %v858, %v854
    %v860 = vmul.f32 %v844, %v859
    %v861 = vmul.f32 %v843, %v776
    %v862 = vsub.f32 1.0, %v860
    %v863 = vmul.f32 %v862, %v781
    %v864 = vadd.f32 %v861, %v863
    %v865 = vsub.f32 %v759, %v762
    %v866 = vsub.f32 %v763, %v762
    %v867 = vrcp.pop %v866
    %v868 = vmul.f32 %v866, %v867
    %v869 = vsub.f32 1.0, %v868
    %v870 = vmul.f32 %v867, %v869
    %v871 = vadd.f32 %v867, %v870
    %vm872 = vweird.f32 %v866
    %vm873 = vweird.f32 %v867
    %vm874 = vmor %vm872, %vm873
    %v875 = vsel %vm874, %v867, %v871
    %v876 = vand.u32 2147483647, %v866
    %vm877 = vcmp.eq.f32.partialorder %v876, 8.507059e+37
    %v878 = vand.u32 %v866, 2147483648
    %v879 = vor.u32 1.1754944e-38, %v878
    %v880 = vsel %vm877, %v879, %v875
    %v881 = vmul.f32 %v865, %v880
    %v882 = vmul.f32 %v860, %v781
    %v883 = vsub.f32 1.0, %v881
    %v884 = vmul.f32 %v883, %v786
    %v885 = vadd.f32 %v882, %v884
    %v886 = vsub.f32 %v759, %v763
    %v887 = vsub.f32 %v764, %v763
    %v888 = vrcp.pop %v887
    %v889 = vmul.f32 %v887, %v888
    %v890 = vsub.f32 1.0, %v889
    %v891 = vmul.f32 %v888, %v890
    %v892 = vadd.f32 %v888, %v891
    %vm893 = vweird.f32 %v887
    %vm894 = vweird.f32 %v888
    %vm895 = vmor %vm893, %vm894
    %v896 = vsel %vm895, %v888, %v892
    %v897 = vand.u32 2147483647, %v887
    %vm898 = vcmp.eq.f32.partialorder %v897, 8.507059e+37
    %v899 = vand.u32 %v887, 2147483648
    %v900 = vor.u32 1.1754944e-38, %v899
    %v901 = vsel %vm898, %v900, %v896
    %v902 = vmul.f32 %v886, %v901
    %v903 = vmul.f32 %v881, %v786
    %v904 = vsub.f32 1.0, %v902
    %v905 = vmul.f32 %v904, %v791
    %v906 = vadd.f32 %v903, %v905
    %v907 = vsub.f32 %v759, %v764
    %v908 = vsub.f32 %v765, %v764
    %v909 = vrcp.pop %v908
    %v910 = vmul.f32 %v908, %v909
    %v911 = vsub.f32 1.0, %v910
    %v912 = vmul.f32 %v909, %v911
    %v913 = vadd.f32 %v909, %v912
    %vm914 = vweird.f32 %v908
    %vm915 = vweird.f32 %v909
    %vm916 = vmor %vm914, %vm915
    %v917 = vsel %vm916, %v909, %v913
    %v918 = vand.u32 2147483647, %v908
    %vm919 = vcmp.eq.f32.partialorder %v918, 8.507059e+37
    %v920 = vand.u32 %v908, 2147483648
    %v921 = vor.u32 1.1754944e-38, %v920
    %v922 = vsel %vm919, %v921, %v917
    %v923 = vmul.f32 %v907, %v922
    %v924 = vmul.f32 %v902, %v791
    %v925 = vsub.f32 1.0, %v923
    %v926 = vmul.f32 %v925, %v796
    %v927 = vadd.f32 %v924, %v926
    %v928 = vsub.f32 %v759, %v765
    %v929 = vsub.f32 %v766, %v765
    %v930 = vrcp.pop %v929
    %v931 = vmul.f32 %v929, %v930
    %v932 = vsub.f32 1.0, %v931
    %v933 = vmul.f32 %v930, %v932
    %v934 = vadd.f32 %v930, %v933
    %vm935 = vweird.f32 %v929
    %vm936 = vweird.f32 %v930
    %vm937 = vmor %vm935, %vm936
    %v938 = vsel %vm937, %v930, %v934
    %v939 = vand.u32 2147483647, %v929
    %vm940 = vcmp.eq.f32.partialorder %v939, 8.507059e+37
    %v941 = vand.u32 %v929, 2147483648
    %v942 = vor.u32 1.1754944e-38, %v941
    %v943 = vsel %vm940, %v942, %v938
    %v944 = vmul.f32 %v928, %v943
    %v945 = vmul.f32 %v923, %v796
    %v946 = vsub.f32 1.0, %v944
    %v947 = vmul.f32 %v946, %v801
    %v948 = vadd.f32 %v945, %v947
    %v949 = vsub.f32 %v759, %v766
    %v950 = vsub.f32 %v767, %v766
    %v951 = vrcp.pop %v950
    %v952 = vmul.f32 %v950, %v951
    %v953 = vsub.f32 1.0, %v952
    %v954 = vmul.f32 %v951, %v953
    %v955 = vadd.f32 %v951, %v954
    %vm956 = vweird.f32 %v950
    %vm957 = vweird.f32 %v951
    %vm958 = vmor %vm956, %vm957
    %v959 = vsel %vm958, %v951, %v955
    %v960 = vand.u32 2147483647, %v950
    %vm961 = vcmp.eq.f32.partialorder %v960, 8.507059e+37
    %v962 = vand.u32 %v950, 2147483648
    %v963 = vor.u32 1.1754944e-38, %v962
    %v964 = vsel %vm961, %v963, %v959
    %v965 = vmul.f32 %v949, %v964
    %v966 = vmul.f32 %v944, %v801
    %v967 = vsub.f32 1.0, %v965
    %v968 = vmul.f32 %v967, %v806
    %v969 = vadd.f32 %v966, %v968
    %v970 = vsub.f32 %v759, %v767
    %v971 = vsub.f32 %v768, %v767
    %v972 = vrcp.pop %v971
    %v973 = vmul.f32 %v971, %v972
    %v974 = vsub.f32 1.0, %v973
    %v975 = vmul.f32 %v972, %v974
    %v976 = vadd.f32 %v972, %v975
    %vm977 = vweird.f32 %v971
    %vm978 = vweird.f32 %v972
    %vm979 = vmor %vm977, %vm978
    %v980 = vsel %vm979, %v972, %v976
    %v981 = vand.u32 2147483647, %v971
    %vm982 = vcmp.eq.f32.partialorder %v981, 8.507059e+37
    %v983 = vand.u32 %v971, 2147483648
    %v984 = vor.u32 1.1754944e-38, %v983
    %v985 = vsel %vm982, %v984, %v980
    %v986 = vmul.f32 %v970, %v985
    %v987 = vmul.f32 %v965, %v806
    %v988 = vsub.f32 1.0, %v986
    %v989 = vmul.f32 %v988, %v811
    %v990 = vadd.f32 %v987, %v989
    %v991 = vsub.f32 %v759, %v768
    %v992 = vsub.f32 %v769, %v768
    %v993 = vrcp.pop %v992
    %v994 = vmul.f32 %v992, %v993
    %v995 = vsub.f32 1.0, %v994
    %v996 = vmul.f32 %v993, %v995
    %v997 = vadd.f32 %v993, %v996
    %vm998 = vweird.f32 %v992
    %vm999 = vweird.f32 %v993
    %vm1000 = vmor %vm998, %vm999
    %v1001 = vsel %vm1000, %v993, %v997
    %v1002 = vand.u32 2147483647, %v992
    %vm1003 = vcmp.eq.f32.partialorder %v1002, 8.507059e+37
    %v1004 = vand.u32 %v992, 2147483648
    %v1005 = vor.u32 1.1754944e-38, %v1004
    %v1006 = vsel %vm1003, %v1005, %v1001
    %v1007 = vmul.f32 %v991, %v1006
    %v1008 = vmul.f32 %v986, %v811
    %v1009 = vsub.f32 1.0, %v1007
    %v1010 = vmul.f32 %v1009, %v816
    %v1011 = vadd.f32 %v1008, %v1010
    %v1012 = vsub.f32 %v759, %v769
    %v1013 = vsub.f32 %v770, %v769
    %v1014 = vrcp.pop %v1013
    %v1015 = vmul.f32 %v1013, %v1014
    %v1016 = vsub.f32 1.0, %v1015
    %v1017 = vmul.f32 %v1014, %v1016
    %v1018 = vadd.f32 %v1014, %v1017
    %vm1019 = vweird.f32 %v1013
    %vm1020 = vweird.f32 %v1014
    %vm1021 = vmor %vm1019, %vm1020
    %v1022 = vsel %vm1021, %v1014, %v1018
    %v1023 = vand.u32 2147483647, %v1013
    %vm1024 = vcmp.eq.f32.partialorder %v1023, 8.507059e+37
    %v1025 = vand.u32 %v1013, 2147483648
    %v1026 = vor.u32 1.1754944e-38, %v1025
    %v1027 = vsel %vm1024, %v1026, %v1022
    %v1028 = vmul.f32 %v1012, %v1027
    %v1029 = vmul.f32 %v1007, %v816
    %v1030 = vsub.f32 1.0, %v1028
    %v1031 = vmul.f32 %v1030, %v821
    %v1032 = vadd.f32 %v1029, %v1031
    %v1033 = vsub.f32 %v759, %v770
    %v1034 = vsub.f32 %v771, %v770
    %v1035 = vrcp.pop %v1034
    %v1036 = vmul.f32 %v1034, %v1035
    %v1037 = vsub.f32 1.0, %v1036
    %v1038 = vmul.f32 %v1035, %v1037
    %v1039 = vadd.f32 %v1035, %v1038
    %vm1040 = vweird.f32 %v1034
    %vm1041 = vweird.f32 %v1035
    %vm1042 = vmor %vm1040, %vm1041
    %v1043 = vsel %vm1042, %v1035, %v1039
    %v1044 = vand.u32 2147483647, %v1034
    %vm1045 = vcmp.eq.f32.partialorder %v1044, 8.507059e+37
    %v1046 = vand.u32 %v1034, 2147483648
    %v1047 = vor.u32 1.1754944e-38, %v1046
    %v1048 = vsel %vm1045, %v1047, %v1043
    %v1049 = vmul.f32 %v1033, %v1048
    %v1050 = vmul.f32 %v1028, %v821
    %v1051 = vsub.f32 1.0, %v1049
    %v1052 = vmul.f32 %v1051, %v826
    %v1053 = vadd.f32 %v1050, %v1052
    %v1054 = vsub.f32 %v762, %v760
    %v1055 = vrcp.pop %v1054
    %v1056 = vmul.f32 %v1054, %v1055
    %v1057 = vsub.f32 1.0, %v1056
    %v1058 = vmul.f32 %v1055, %v1057
    %v1059 = vadd.f32 %v1055, %v1058
    %vm1060 = vweird.f32 %v1054
    %vm1061 = vweird.f32 %v1055
    %vm1062 = vmor %vm1060, %vm1061
    %v1063 = vsel %vm1062, %v1055, %v1059
    %v1064 = vand.u32 2147483647, %v1054
    %vm1065 = vcmp.eq.f32.partialorder %v1064, 8.507059e+37
    %v1066 = vand.u32 %v1054, 2147483648
    %v1067 = vor.u32 1.1754944e-38, %v1066
    %v1068 = vsel %vm1065, %v1067, %v1063
    %v1069 = vmul.f32 %v827, %v1068
    %v1070 = vsub.f32 %v763, %v761
    %v1071 = vrcp.pop %v1070
    %v1072 = vmul.f32 %v1070, %v1071
    %v1073 = vsub.f32 1.0, %v1072
    %v1074 = vmul.f32 %v1071, %v1073
    %v1075 = vadd.f32 %v1071, %v1074
    %vm1076 = vweird.f32 %v1070
    %vm1077 = vweird.f32 %v1071
    %vm1078 = vmor %vm1076, %vm1077
    %v1079 = vsel %vm1078, %v1071, %v1075
    %v1080 = vand.u32 2147483647, %v1070
    %vm1081 = vcmp.eq.f32.partialorder %v1080, 8.507059e+37
    %v1082 = vand.u32 %v1070, 2147483648
    %v1083 = vor.u32 1.1754944e-38, %v1082
    %v1084 = vsel %vm1081, %v1083, %v1079
    %v1085 = vmul.f32 %v844, %v1084
    %v1086 = vmul.f32 %v1069, %v864
    %v1087 = vsub.f32 1.0, %v1085
    %v1088 = vmul.f32 %v1087, %v885
    %v1089 = vadd.f32 %v1086, %v1088
    %v1090 = vsub.f32 %v764, %v762
    %v1091 = vrcp.pop %v1090
    %v1092 = vmul.f32 %v1090, %v1091
    %v1093 = vsub.f32 1.0, %v1092
    %v1094 = vmul.f32 %v1091, %v1093
    %v1095 = vadd.f32 %v1091, %v1094
    %vm1096 = vweird.f32 %v1090
    %vm1097 = vweird.f32 %v1091
    %vm1098 = vmor %vm1096, %vm1097
    %v1099 = vsel %vm1098, %v1091, %v1095
    %v1100 = vand.u32 2147483647, %v1090
    %vm1101 = vcmp.eq.f32.partialorder %v1100, 8.507059e+37
    %v1102 = vand.u32 %v1090, 2147483648
    %v1103 = vor.u32 1.1754944e-38, %v1102
    %v1104 = vsel %vm1101, %v1103, %v1099
    %v1105 = vmul.f32 %v865, %v1104
    %v1106 = vmul.f32 %v1085, %v885
    %v1107 = vsub.f32 1.0, %v1105
    %v1108 = vmul.f32 %v1107, %v906
    %v1109 = vadd.f32 %v1106, %v1108
    %v1110 = vsub.f32 %v765, %v763
    %v1111 = vrcp.pop %v1110
    %v1112 = vmul.f32 %v1110, %v1111
    %v1113 = vsub.f32 1.0, %v1112
    %v1114 = vmul.f32 %v1111, %v1113
    %v1115 = vadd.f32 %v1111, %v1114
    %vm1116 = vweird.f32 %v1110
    %vm1117 = vweird.f32 %v1111
    %vm1118 = vmor %vm1116, %vm1117
    %v1119 = vsel %vm1118, %v1111, %v1115
    %v1120 = vand.u32 2147483647, %v1110
    %vm1121 = vcmp.eq.f32.partialorder %v1120, 8.507059e+37
    %v1122 = vand.u32 %v1110, 2147483648
    %v1123 = vor.u32 1.1754944e-38, %v1122
    %v1124 = vsel %vm1121, %v1123, %v1119
    %v1125 = vmul.f32 %v886, %v1124
    %v1126 = vmul.f32 %v1105, %v906
    %v1127 = vsub.f32 1.0, %v1125
    %v1128 = vmul.f32 %v1127, %v927
    %v1129 = vadd.f32 %v1126, %v1128
    %v1130 = vsub.f32 %v766, %v764
    %v1131 = vrcp.pop %v1130
    %v1132 = vmul.f32 %v1130, %v1131
    %v1133 = vsub.f32 1.0, %v1132
    %v1134 = vmul.f32 %v1131, %v1133
    %v1135 = vadd.f32 %v1131, %v1134
    %vm1136 = vweird.f32 %v1130
    %vm1137 = vweird.f32 %v1131
    %vm1138 = vmor %vm1136, %vm1137
    %v1139 = vsel %vm1138, %v1131, %v1135
    %v1140 = vand.u32 2147483647, %v1130
    %vm1141 = vcmp.eq.f32.partialorder %v1140, 8.507059e+37
    %v1142 = vand.u32 %v1130, 2147483648
    %v1143 = vor.u32 1.1754944e-38, %v1142
    %v1144 = vsel %vm1141, %v1143, %v1139
    %v1145 = vmul.f32 %v907, %v1144
    %v1146 = vmul.f32 %v1125, %v927
    %v1147 = vsub.f32 1.0, %v1145
    %v1148 = vmul.f32 %v1147, %v948
    %v1149 = vadd.f32 %v1146, %v1148
    %v1150 = vsub.f32 %v767, %v765
    %v1151 = vrcp.pop %v1150
    %v1152 = vmul.f32 %v1150, %v1151
    %v1153 = vsub.f32 1.0, %v1152
    %v1154 = vmul.f32 %v1151, %v1153
    %v1155 = vadd.f32 %v1151, %v1154
    %vm1156 = vweird.f32 %v1150
    %vm1157 = vweird.f32 %v1151
    %vm1158 = vmor %vm1156, %vm1157
    %v1159 = vsel %vm1158, %v1151, %v1155
    %v1160 = vand.u32 2147483647, %v1150
    %vm1161 = vcmp.eq.f32.partialorder %v1160, 8.507059e+37
    %v1162 = vand.u32 %v1150, 2147483648
    %v1163 = vor.u32 1.1754944e-38, %v1162
    %v1164 = vsel %vm1161, %v1163, %v1159
    %v1165 = vmul.f32 %v928, %v1164
    %v1166 = vmul.f32 %v1145, %v948
    %v1167 = vsub.f32 1.0, %v1165
    %v1168 = vmul.f32 %v1167, %v969
    %v1169 = vadd.f32 %v1166, %v1168
    %v1170 = vsub.f32 %v768, %v766
    %v1171 = vrcp.pop %v1170
    %v1172 = vmul.f32 %v1170, %v1171
    %v1173 = vsub.f32 1.0, %v1172
    %v1174 = vmul.f32 %v1171, %v1173
    %v1175 = vadd.f32 %v1171, %v1174
    %vm1176 = vweird.f32 %v1170
    %vm1177 = vweird.f32 %v1171
    %vm1178 = vmor %vm1176, %vm1177
    %v1179 = vsel %vm1178, %v1171, %v1175
    %v1180 = vand.u32 2147483647, %v1170
    %vm1181 = vcmp.eq.f32.partialorder %v1180, 8.507059e+37
    %v1182 = vand.u32 %v1170, 2147483648
    %v1183 = vor.u32 1.1754944e-38, %v1182
    %v1184 = vsel %vm1181, %v1183, %v1179
    %v1185 = vmul.f32 %v949, %v1184
    %v1186 = vmul.f32 %v1165, %v969
    %v1187 = vsub.f32 1.0, %v1185
    %v1188 = vmul.f32 %v1187, %v990
    %v1189 = vadd.f32 %v1186, %v1188
    %v1190 = vsub.f32 %v769, %v767
    %v1191 = vrcp.pop %v1190
    %v1192 = vmul.f32 %v1190, %v1191
    %v1193 = vsub.f32 1.0, %v1192
    %v1194 = vmul.f32 %v1191, %v1193
    %v1195 = vadd.f32 %v1191, %v1194
    %vm1196 = vweird.f32 %v1190
    %vm1197 = vweird.f32 %v1191
    %vm1198 = vmor %vm1196, %vm1197
    %v1199 = vsel %vm1198, %v1191, %v1195
    %v1200 = vand.u32 2147483647, %v1190
    %vm1201 = vcmp.eq.f32.partialorder %v1200, 8.507059e+37
    %v1202 = vand.u32 %v1190, 2147483648
    %v1203 = vor.u32 1.1754944e-38, %v1202
    %v1204 = vsel %vm1201, %v1203, %v1199
    %v1205 = vmul.f32 %v970, %v1204
    %v1206 = vmul.f32 %v1185, %v990
    %v1207 = vsub.f32 1.0, %v1205
    %v1208 = vmul.f32 %v1207, %v1011
    %v1209 = vadd.f32 %v1206, %v1208
    %v1210 = vsub.f32 %v770, %v768
    %v1211 = vrcp.pop %v1210
    %v1212 = vmul.f32 %v1210, %v1211
    %v1213 = vsub.f32 1.0, %v1212
    %v1214 = vmul.f32 %v1211, %v1213
    %v1215 = vadd.f32 %v1211, %v1214
    %vm1216 = vweird.f32 %v1210
    %vm1217 = vweird.f32 %v1211
    %vm1218 = vmor %vm1216, %vm1217
    %v1219 = vsel %vm1218, %v1211, %v1215
    %v1220 = vand.u32 2147483647, %v1210
    %vm1221 = vcmp.eq.f32.partialorder %v1220, 8.507059e+37
    %v1222 = vand.u32 %v1210, 2147483648
    %v1223 = vor.u32 1.1754944e-38, %v1222
    %v1224 = vsel %vm1221, %v1223, %v1219
    %v1225 = vmul.f32 %v991, %v1224
    %v1226 = vmul.f32 %v1205, %v1011
    %v1227 = vsub.f32 1.0, %v1225
    %v1228 = vmul.f32 %v1227, %v1032
    %v1229 = vadd.f32 %v1226, %v1228
    %v1230 = vsub.f32 %v771, %v769
    %v1231 = vrcp.pop %v1230
    %v1232 = vmul.f32 %v1230, %v1231
    %v1233 = vsub.f32 1.0, %v1232
    %v1234 = vmul.f32 %v1231, %v1233
    %v1235 = vadd.f32 %v1231, %v1234
    %vm1236 = vweird.f32 %v1230
    %vm1237 = vweird.f32 %v1231
    %vm1238 = vmor %vm1236, %vm1237
    %v1239 = vsel %vm1238, %v1231, %v1235
    %v1240 = vand.u32 2147483647, %v1230
    %vm1241 = vcmp.eq.f32.partialorder %v1240, 8.507059e+37
    %v1242 = vand.u32 %v1230, 2147483648
    %v1243 = vor.u32 1.1754944e-38, %v1242
    %v1244 = vsel %vm1241, %v1243, %v1239
    %v1245 = vmul.f32 %v1012, %v1244
    %v1246 = vmul.f32 %v1225, %v1032
    %v1247 = vsub.f32 1.0, %v1245
    %v1248 = vmul.f32 %v1247, %v1053
    %v1249 = vadd.f32 %v1246, %v1248
    %v1250 = vsub.f32 %v763, %v760
    %v1251 = vrcp.pop %v1250
    %v1252 = vmul.f32 %v1250, %v1251
    %v1253 = vsub.f32 1.0, %v1252
    %v1254 = vmul.f32 %v1251, %v1253
    %v1255 = vadd.f32 %v1251, %v1254
    %vm1256 = vweird.f32 %v1250
    %vm1257 = vweird.f32 %v1251
    %vm1258 = vmor %vm1256, %vm1257
    %v1259 = vsel %vm1258, %v1251, %v1255
    %v1260 = vand.u32 2147483647, %v1250
    %vm1261 = vcmp.eq.f32.partialorder %v1260, 8.507059e+37
    %v1262 = vand.u32 %v1250, 2147483648
    %v1263 = vor.u32 1.1754944e-38, %v1262
    %v1264 = vsel %vm1261, %v1263, %v1259
    %v1265 = vmul.f32 %v827, %v1264
    %v1266 = vsub.f32 %v764, %v761
    %v1267 = vrcp.pop %v1266
    %v1268 = vmul.f32 %v1266, %v1267
    %v1269 = vsub.f32 1.0, %v1268
    %v1270 = vmul.f32 %v1267, %v1269
    %v1271 = vadd.f32 %v1267, %v1270
    %vm1272 = vweird.f32 %v1266
    %vm1273 = vweird.f32 %v1267
    %vm1274 = vmor %vm1272, %vm1273
    %v1275 = vsel %vm1274, %v1267, %v1271
    %v1276 = vand.u32 2147483647, %v1266
    %vm1277 = vcmp.eq.f32.partialorder %v1276, 8.507059e+37
    %v1278 = vand.u32 %v1266, 2147483648
    %v1279 = vor.u32 1.1754944e-38, %v1278
    %v1280 = vsel %vm1277, %v1279, %v1275
    %v1281 = vmul.f32 %v844, %v1280
    %v1282 = vmul.f32 %v1265, %v1089
    %v1283 = vsub.f32 1.0, %v1281
    %v1284 = vmul.f32 %v1283, %v1109
    %v1285 = vadd.f32 %v1282, %v1284
    %v1286 = vsub.f32 %v765, %v762
    %v1287 = vrcp.pop %v1286
    %v1288 = vmul.f32 %v1286, %v1287
    %v1289 = vsub.f32 1.0, %v1288
    %v1290 = vmul.f32 %v1287, %v1289
    %v1291 = vadd.f32 %v1287, %v1290
    %vm1292 = vweird.f32 %v1286
    %vm1293 = vweird.f32 %v1287
    %vm1294 = vmor %vm1292, %vm1293
    %v1295 = vsel %vm1294, %v1287, %v1291
    %v1296 = vand.u32 2147483647, %v1286
    %vm1297 = vcmp.eq.f32.partialorder %v1296, 8.507059e+37
    %v1298 = vand.u32 %v1286, 2147483648
    %v1299 = vor.u32 1.1754944e-38, %v1298
    %v1300 = vsel %vm1297, %v1299, %v1295
    %v1301 = vmul.f32 %v865, %v1300
    %v1302 = vmul.f32 %v1281, %v1109
    %v1303 = vsub.f32 1.0, %v1301
    %v1304 = vmul.f32 %v1303, %v1129
    %v1305 = vadd.f32 %v1302, %v1304
    %v1306 = vsub.f32 %v766, %v763
    %v1307 = vrcp.pop %v1306
    %v1308 = vmul.f32 %v1306, %v1307
    %v1309 = vsub.f32 1.0, %v1308
    %v1310 = vmul.f32 %v1307, %v1309
    %v1311 = vadd.f32 %v1307, %v1310
    %vm1312 = vweird.f32 %v1306
    %vm1313 = vweird.f32 %v1307
    %vm1314 = vmor %vm1312, %vm1313
    %v1315 = vsel %vm1314, %v1307, %v1311
    %v1316 = vand.u32 2147483647, %v1306
    %vm1317 = vcmp.eq.f32.partialorder %v1316, 8.507059e+37
    %v1318 = vand.u32 %v1306, 2147483648
    %v1319 = vor.u32 1.1754944e-38, %v1318
    %v1320 = vsel %vm1317, %v1319, %v1315
    %v1321 = vmul.f32 %v886, %v1320
    %v1322 = vmul.f32 %v1301, %v1129
    %v1323 = vsub.f32 1.0, %v1321
    %v1324 = vmul.f32 %v1323, %v1149
    %v1325 = vadd.f32 %v1322, %v1324
    %v1326 = vsub.f32 %v767, %v764
    %v1327 = vrcp.pop %v1326
    %v1328 = vmul.f32 %v1326, %v1327
    %v1329 = vsub.f32 1.0, %v1328
    %v1330 = vmul.f32 %v1327, %v1329
    %v1331 = vadd.f32 %v1327, %v1330
    %vm1332 = vweird.f32 %v1326
    %vm1333 = vweird.f32 %v1327
    %vm1334 = vmor %vm1332, %vm1333
    %v1335 = vsel %vm1334, %v1327, %v1331
    %v1336 = vand.u32 2147483647, %v1326
    %vm1337 = vcmp.eq.f32.partialorder %v1336, 8.507059e+37
    %v1338 = vand.u32 %v1326, 2147483648
    %v1339 = vor.u32 1.1754944e-38, %v1338
    %v1340 = vsel %vm1337, %v1339, %v1335
    %v1341 = vmul.f32 %v907, %v1340
    %v1342 = vmul.f32 %v1321, %v1149
    %v1343 = vsub.f32 1.0, %v1341
    %v1344 = vmul.f32 %v1343, %v1169
    %v1345 = vadd.f32 %v1342, %v1344
    %v1346 = vsub.f32 %v768, %v765
    %v1347 = vrcp.pop %v1346
    %v1348 = vmul.f32 %v1346, %v1347
    %v1349 = vsub.f32 1.0, %v1348
    %v1350 = vmul.f32 %v1347, %v1349
    %v1351 = vadd.f32 %v1347, %v1350
    %vm1352 = vweird.f32 %v1346
    %vm1353 = vweird.f32 %v1347
    %vm1354 = vmor %vm1352, %vm1353
    %v1355 = vsel %vm1354, %v1347, %v1351
    %v1356 = vand.u32 2147483647, %v1346
    %vm1357 = vcmp.eq.f32.partialorder %v1356, 8.507059e+37
    %v1358 = vand.u32 %v1346, 2147483648
    %v1359 = vor.u32 1.1754944e-38, %v1358
    %v1360 = vsel %vm1357, %v1359, %v1355
    %v1361 = vmul.f32 %v928, %v1360
    %v1362 = vmul.f32 %v1341, %v1169
    %v1363 = vsub.f32 1.0, %v1361
    %v1364 = vmul.f32 %v1363, %v1189
    %v1365 = vadd.f32 %v1362, %v1364
    %v1366 = vsub.f32 %v769, %v766
    %v1367 = vrcp.pop %v1366
    %v1368 = vmul.f32 %v1366, %v1367
    %v1369 = vsub.f32 1.0, %v1368
    %v1370 = vmul.f32 %v1367, %v1369
    %v1371 = vadd.f32 %v1367, %v1370
    %vm1372 = vweird.f32 %v1366
    %vm1373 = vweird.f32 %v1367
    %vm1374 = vmor %vm1372, %vm1373
    %v1375 = vsel %vm1374, %v1367, %v1371
    %v1376 = vand.u32 2147483647, %v1366
    %vm1377 = vcmp.eq.f32.partialorder %v1376, 8.507059e+37
    %v1378 = vand.u32 %v1366, 2147483648
    %v1379 = vor.u32 1.1754944e-38, %v1378
    %v1380 = vsel %vm1377, %v1379, %v1375
    %v1381 = vmul.f32 %v949, %v1380
    %v1382 = vmul.f32 %v1361, %v1189
    %v1383 = vsub.f32 1.0, %v1381
    %v1384 = vmul.f32 %v1383, %v1209
    %v1385 = vadd.f32 %v1382, %v1384
    %v1386 = vsub.f32 %v770, %v767
    %v1387 = vrcp.pop %v1386
    %v1388 = vmul.f32 %v1386, %v1387
    %v1389 = vsub.f32 1.0, %v1388
    %v1390 = vmul.f32 %v1387, %v1389
    %v1391 = vadd.f32 %v1387, %v1390
    %vm1392 = vweird.f32 %v1386
    %vm1393 = vweird.f32 %v1387
    %vm1394 = vmor %vm1392, %vm1393
    %v1395 = vsel %vm1394, %v1387, %v1391
    %v1396 = vand.u32 2147483647, %v1386
    %vm1397 = vcmp.eq.f32.partialorder %v1396, 8.507059e+37
    %v1398 = vand.u32 %v1386, 2147483648
    %v1399 = vor.u32 1.1754944e-38, %v1398
    %v1400 = vsel %vm1397, %v1399, %v1395
    %v1401 = vmul.f32 %v970, %v1400
    %v1402 = vmul.f32 %v1381, %v1209
    %v1403 = vsub.f32 1.0, %v1401
    %v1404 = vmul.f32 %v1403, %v1229
    %v1405 = vadd.f32 %v1402, %v1404
    %v1406 = vsub.f32 %v771, %v768
    %v1407 = vrcp.pop %v1406
    %v1408 = vmul.f32 %v1406, %v1407
    %v1409 = vsub.f32 1.0, %v1408
    %v1410 = vmul.f32 %v1407, %v1409
    %v1411 = vadd.f32 %v1407, %v1410
    %vm1412 = vweird.f32 %v1406
    %vm1413 = vweird.f32 %v1407
    %vm1414 = vmor %vm1412, %vm1413
    %v1415 = vsel %vm1414, %v1407, %v1411
    %v1416 = vand.u32 2147483647, %v1406
    %vm1417 = vcmp.eq.f32.partialorder %v1416, 8.507059e+37
    %v1418 = vand.u32 %v1406, 2147483648
    %v1419 = vor.u32 1.1754944e-38, %v1418
    %v1420 = vsel %vm1417, %v1419, %v1415
    %v1421 = vmul.f32 %v991, %v1420
    %v1422 = vmul.f32 %v1401, %v1229
    %v1423 = vsub.f32 1.0, %v1421
    %v1424 = vmul.f32 %v1423, %v1249
    %v1425 = vadd.f32 %v1422, %v1424
    %v1426 = vld [vmem:[%s690 + $0x8] sm:$0x3f]
    %v1427 = vmul.f32 %v1426, %v1285
    %v1428 = vld [vmem:[%s693 + $0x8] sm:$0x3f]
    %v1429 = vmul.f32 %v1428, %v1305
    %v1430 = vadd.f32 %v1427, %v1429
    %v1431 = vld [vmem:[%s697 + $0x8] sm:$0x3f]
    %v1432 = vmul.f32 %v1431, %v1325
    %v1433 = vadd.f32 %v1430, %v1432
    %v1434 = vld [vmem:[%s701 + $0x8] sm:$0x3f]
    %v1435 = vmul.f32 %v1434, %v1345
    %v1436 = vadd.f32 %v1433, %v1435
    %v1437 = vld [vmem:[%s705 + $0x8] sm:$0x3f]
    %v1438 = vmul.f32 %v1437, %v1365
    %v1439 = vadd.f32 %v1436, %v1438
    %v1440 = vld [vmem:[%s709 + $0x8] sm:$0x3f]
    %v1441 = vmul.f32 %v1440, %v1385
    %v1442 = vadd.f32 %v1439, %v1441
    %v1443 = vld [vmem:[%s713 + $0x8] sm:$0x3f]
    %v1444 = vmul.f32 %v1443, %v1405
    %v1445 = vadd.f32 %v1442, %v1444
    %v1446 = vld [vmem:[%s717 + $0x8] sm:$0x3f]
    %v1447 = vmul.f32 %v1446, %v1425
    %v1448 = vadd.f32 %v1445, %v1447
    %v1449 = vxor.u32 %v759, 2147483648
    %v1450 = vmul.f32 %v1449, 1.442695
    %v1451 = vpow.pop %v1450
    %v1452 = vadd.f32 %v1451, 1.0
    %v1453 = vrcp.pop %v1452
    %v1454 = vmul.f32 %v1452, %v1453
    %v1455 = vsub.f32 1.0, %v1454
    %v1456 = vmul.f32 %v1453, %v1455
    %v1457 = vadd.f32 %v1453, %v1456
    %vm1458 = vweird.f32 %v1452
    %vm1459 = vweird.f32 %v1453
    %vm1460 = vmor %vm1458, %vm1459
    %v1461 = vsel %vm1460, %v1453, %v1457
    %v1462 = vand.u32 2147483647, %v1452
    %vm1463 = vcmp.eq.f32.partialorder %v1462, 8.507059e+37
    %v1464 = vand.u32 %v1452, 2147483648
    %v1465 = vor.u32 1.1754944e-38, %v1464
    %v1466 = vsel %vm1463, %v1465, %v1461
    %v1467 = vmul.f32 1.0, %v1466
    %v1468 = vmul.f32 %v759, %v1467
    %v1469 = vld [vmem:[%s741 + $0x8] sm:$0x3f]
    %v1470 = vld [vmem:[%s743 + $0x8] sm:$0x3f]
    %v1471 = vmul.f32 %v1470, %v1468
    %v1472 = vld [vmem:[%s746 + $0x8] sm:$0x3f]
    %v1473 = vmul.f32 %v1472, %v1448
    %v1474 = vadd.f32 %v1471, %v1473
    %v1475 = vmul.f32 %v1469, %v1474
    %v1477 = vrot.slane %v1475, 2
    %v1479 = vadd.f32 %v1475, %v1477
    %v1480 = vrot.slane %v1475, 4
    %v1482 = vadd.f32 %v1479, %v1480
    %1483 = vst [vmem:[#allocation2 + $0x2] sm:$0x3] %v1482
    // Predicated region
    $region10: #{kan_layer_forward.1} parent=1 // pred_check
      _
    $region11: #{kan_layer_forward.1} parent=1 // pred_check_branch
      %1485 = sbr.rel (0) target = $region13
    $region12: #{kan_layer_forward.1} parent=1 // pred_region
      %1487 = vsyncadd [#allocation3], 0
      %s1489 = sshll.u32 [#allocation2], 4
      %s1490 = int_to_ptr.vmem [resolvable:$true] %s1489
      %s1491 = sshll.u32 %s2, 4
      %s1492 = int_to_ptr.hbm [resolvable:$true] %s1491
      %1494 = dma.vmem_to_hbm [thread:$0]  %s1490, 64, %s1492, [#allocation3]
    $region13: #{kan_layer_forward.1} parent=1 // pred_fallthru
      _
    // Predicated region
    $region14: #{kan_layer_forward.1} parent=1 // pred_check
      _
    $region15: #{kan_layer_forward.1} parent=1 // pred_check_branch
      %1496 = sbr.rel (0) target = $region17
    $region16: #{kan_layer_forward.1} parent=1 // pred_region
      %1498 = dma.done [#allocation3], 64
    $region17: #{kan_layer_forward.1} parent=1 // pred_fallthru
      _
    %1499 = vsyncpa [#allocation3], 1

</llo_original>
